<compile_context>
chip_gen: v5e
topology: v5e:2x2
jax: 0.10.0
libtpu: 0.0.40
codegen_flags: <defaults>
</compile_context>

<pallas_src>
import jax
import jax.numpy as jnp
import numpy as np
from jax.experimental import pallas as pl
from jax.experimental.pallas import tpu as pltpu


def mograssmann_kernel(pm_ref, x_ref, bp_ref, cp_ref, e_ref, out_ref):
    f32 = jnp.float32
    dim = bp_ref.shape[0]
    nc = bp_ref.shape[2]
    L = e_ref.shape[1]           # lanes: l = c*bt + b
    bt = L // nc

    # (r == j) mask in the wrapper-permuted layout Mp[r, j, c] = M_c[j, r]
    rr = jax.lax.broadcasted_iota(jnp.int32, (dim, dim, nc), 0)
    jj = jax.lax.broadcasted_iota(jnp.int32, (dim, dim, nc), 1)
    eye3 = (rr == jj).astype(f32)

    # ---- parameter fixup (relu diag + abs-row-sum diag), all components at once
    def fixup(Mp):
        diag = jnp.sum(Mp * eye3, axis=0)                        # (dim_j, nc) = M_c[j, j]
        offd = Mp * (1.0 - eye3)
        newdiag = jnp.maximum(diag, 0.0) + jnp.sum(jnp.abs(offd), axis=0)
        return offd + eye3 * newdiag[None, :, :]

    Bp = fixup(bp_ref[...].astype(f32))
    Cp = fixup(cp_ref[...].astype(f32))
    Ap = Bp + Cp                 # sigma_c = C_c @ inv(B_c + C_c);  Ap[r, j, c] = A_c[j, r]

    # ---- one MXU matmul against a constant 0/1 selector expands nc lanes -> L lanes
    E = e_ref[...]
    S = jnp.concatenate([Ap[r] for r in range(dim)] + [Cp[r] for r in range(dim)], axis=0)
    Sexp = jnp.dot(S, E, preferred_element_type=f32)             # (2*dim*dim, L)

    # ---- augmented Gauss-Jordan: solve A^T sigma^T = C^T (no explicit inverse,
    #      no separate sigma FMA loop); all components / batch lanes eliminated at once.
    Ar = [Sexp[r * dim:(r + 1) * dim, :] for r in range(dim)]                       # A^T row r
    Rr = [Sexp[dim * dim + r * dim: dim * dim + (r + 1) * dim, :] for r in range(dim)]  # C^T row r
    for k in range(dim):
        rinv = 1.0 / Ar[k][k:k + 1, :]   # exact: A is diagonally dominant by construction
        rowA = Ar[k] * rinv
        rowR = Rr[k] * rinv
        for i in range(dim):
            if i == k:
                continue
            f = Ar[i][k:k + 1, :]        # shared factor for the A-block and the RHS
            Ar[i] = Ar[i] - f * rowA
            Rr[i] = Rr[i] - f * rowR
        Ar[k] = rowA
        Rr[k] = rowR
    # Rr[j][i, l] = sigma_c[i, j]   (sigma^T row j, already lane-expanded over batch)

    # ---- rows of m^T: off-diag scaled by per-row scalar s_j, diagonal replaced
    xt = x_ref[0]                        # (dim, L): xt[j, l] = x[b, j]
    st = 2.0 * xt - 1.0                  # (-1)**(1 - x) for binary x
    rid = jax.lax.broadcasted_iota(jnp.int32, (dim, 1), 0)
    m = []
    for j in range(dim):
        sig = Rr[j]                      # (dim, L)
        sjj = sig[j:j + 1, :]
        xj = xt[j:j + 1, :]
        dval = xj * sjj + (1.0 - xj) * (1.0 - sjj)
        m.append(jnp.where(rid == j, dval, sig * st[j:j + 1, :]))

    # ---- softmax mixing weights, lane-expanded and folded into the det init
    pm = pm_ref[...].astype(f32)                                 # (nc, 1)
    pm = jnp.exp(pm - jnp.max(pm, axis=0, keepdims=True))
    pm = pm * (1.0 / jnp.sum(pm, axis=0, keepdims=True))
    det = jnp.sum(pm * E, axis=0, keepdims=True)                 # (1, L): p_mixing[c] per lane

    # ---- determinants of all nc*bt matrices at once (pivot-free LU)
    # TODO(synk): no partial pivoting (torch.det uses it).
    for k in range(dim):
        piv = m[k][k:k + 1, :]
        det = det * piv
        rinv = pl.reciprocal(piv, approx=True)                   # EUP slot; VALU stays free
        for i in range(k + 1, dim):
            f = m[i][k:k + 1, :] * rinv
            m[i] = m[i] - f * m[k]

    # ---- mixture sum over components + partial sum(log p) for this batch tile
    p = det[:, 0:bt]
    for c in range(1, nc):
        p = p + det[:, c * bt:(c + 1) * bt]
    out_ref[...] = jnp.sum(jnp.log(p), axis=-1, keepdims=True).reshape(1, 1, 1)


@jax.jit
def mograssmann_forward(x, B, C, p_mixing_un):
    """Equivalent of EstimateMoGrassmann.forward: returns scalar logprob."""
    f32 = jnp.float32
    batch, dim = x.shape
    nc = B.shape[0]

    bt = max(1, 128 // nc)              # fill the 128-lane axis: L = nc*bt = 128
    if batch % bt != 0:
        bt = batch                      # fallback: single tile
    nt = batch // bt
    L = nc * bt

    # ---- wrapper-side layout plumbing (tiny arrays; keeps relayouts out of the kernel)
    Bp = jnp.transpose(B.astype(f32), (2, 1, 0))        # Bp[r, j, c] = B[c, j, r]
    Cp = jnp.transpose(C.astype(f32), (2, 1, 0))
    pm = p_mixing_un.astype(f32).reshape(nc, 1)
    xg = jnp.transpose(x.astype(f32).T.reshape(dim, nt, bt), (1, 0, 2))   # (nt, dim, bt)
    x_tiled = jnp.tile(xg, (1, 1, nc))                   # (nt, dim, L): [g, j, c*bt+b] = x[g*bt+b, j]
    lane = jnp.arange(L, dtype=jnp.int32)
    E = (lane[None, :] // bt == jnp.arange(nc, dtype=jnp.int32)[:, None]).astype(f32)  # (nc, L)

    partial = pl.pallas_call(
        mograssmann_kernel,
        out_shape=jax.ShapeDtypeStruct((nt, 1, 1), f32),
        grid=(nt,),
        in_specs=[
            pl.BlockSpec((nc, 1), lambda g: (0, 0)),
            pl.BlockSpec((1, dim, L), lambda g: (g, 0, 0)),
            pl.BlockSpec((dim, dim, nc), lambda g: (0, 0, 0)),
            pl.BlockSpec((dim, dim, nc), lambda g: (0, 0, 0)),
            pl.BlockSpec((nc, L), lambda g: (0, 0)),
        ],
        out_specs=pl.BlockSpec((1, 1, 1), lambda g: (g, 0, 0)),
        compiler_params=pltpu.CompilerParams(dimension_semantics=("parallel",)),
    )(pm, x_tiled, Bp, Cp, E)
    return jnp.sum(partial) / batch


def reference_forward(x, B, C, p_mixing_un):
    """Pure-JAX reference mirroring the PyTorch forward exactly (binary x)."""
    dim = x.shape[1]
    eye = jnp.eye(dim, dtype=jnp.float32)
    mask = 1.0 - eye

    def comp_sigma(Bi, Ci):
        B_ = Bi * mask + eye * jax.nn.relu(jnp.diag(Bi))
        C_ = Ci * mask + eye * jax.nn.relu(jnp.diag(Ci))
        B_ = B_ + eye * (jnp.sum(jnp.abs(B_), 1) - jnp.diag(B_))
        C_ = C_ + eye * (jnp.sum(jnp.abs(C_), 1) - jnp.diag(C_))
        lambd = B_ @ jnp.linalg.inv(C_) + eye
        return jnp.linalg.inv(lambd)

    sigma = jax.vmap(comp_sigma)(B, C)                     # (nc, dim, dim)
    pm = jax.nn.softmax(p_mixing_un)
    s = (-1.0) ** (1.0 - x)                                # (batch, dim)
    xb = x[:, None, None, :]
    m = mask[None, None] * sigma[None] * s[:, None, None, :] \
        + eye[None, None] * (xb * sigma[None] + (1.0 - xb) * (1.0 - sigma[None]))
    dets = jnp.linalg.det(m)                               # (batch, nc)
    p = (pm * dets).sum(-1)
    return jnp.mean(jnp.log(p))


if __name__ == "__main__":
    batch, dim, nc = 64, 8, 4       # batch=64 -> two 32-sample tiles, L = nc*32 = 128 lanes

    key = jax.random.PRNGKey(0)
    k1, k2, k3, k4 = jax.random.split(key, 4)

    # Deterministic synthetic parameters (B approx C -> sigma approx 0.5*I,
    # keeping p strictly positive so logprob is finite).
    B = 0.1 * jax.random.normal(k1, (nc, dim, dim), dtype=jnp.float32)
    C = B + 0.01 * jax.random.normal(k2, (nc, dim, dim), dtype=jnp.float32)
    p_mixing_un = 0.5 * jax.random.normal(k3, (nc,), dtype=jnp.float32)

    # Binary input samples (batch, dim).
    x = jax.random.bernoulli(k4, 0.5, (batch, dim)).astype(jnp.float32)

    logprob = jax.block_until_ready(mograssmann_forward(x, B, C, p_mixing_un))
    logprob_ref = jax.block_until_ready(reference_forward(x, B, C, p_mixing_un))

    assert np.isfinite(float(logprob)), "logprob is not finite"
    assert np.allclose(float(logprob), float(logprob_ref), rtol=1e-3, atol=1e-3), (
        float(logprob), float(logprob_ref))

    print("KERNEL_OK")
</pallas_src>

<mosaic_0001>
module attributes {stable_mosaic.version = 11 : i64} {
  func.func @mograssmann_kernel(%arg0: i32, %arg1: memref<4x1xf32, #tpu.memory_space<vmem>>, %arg2: memref<1x8x128xf32, #tpu.memory_space<vmem>>, %arg3: memref<8x8x4xf32, #tpu.memory_space<vmem>>, %arg4: memref<8x8x4xf32, #tpu.memory_space<vmem>>, %arg5: memref<4x128xf32, #tpu.memory_space<vmem>>, %arg6: memref<1x1x1xf32, #tpu.memory_space<vmem>>) attributes {dimension_semantics = [#tpu.dimension_semantics<parallel>], iteration_bounds = array<i64: 2>, scalar_prefetch = 0 : i64, scratch_operands = 0 : i64, tpu.core_type = #tpu.core_type<tc>, window_params = [{pipeline_mode = #tpu.pipeline_mode<synchronous>, transform_indices = @transform_0, window_bounds = array<i64: 4, 1>}, {transform_indices = @transform_1, window_bounds = array<i64: 1, 8, 128>}, {pipeline_mode = #tpu.pipeline_mode<synchronous>, transform_indices = @transform_2, window_bounds = array<i64: 8, 8, 4>}, {pipeline_mode = #tpu.pipeline_mode<synchronous>, transform_indices = @transform_3, window_bounds = array<i64: 8, 8, 4>}, {pipeline_mode = #tpu.pipeline_mode<synchronous>, transform_indices = @transform_4, window_bounds = array<i64: 4, 128>}, {transform_indices = @transform_5, window_bounds = array<i64: 1, 1, 1>}]} {
    %0 = tpu.iota {dimensions = array<i32: 0>} : vector<8x8x4xi32>
    %1 = tpu.iota {dimensions = array<i32: 1>} : vector<8x8x4xi32>
    %2 = arith.cmpi eq, %0, %1 : vector<8x8x4xi32>
    %3 = arith.extui %2 : vector<8x8x4xi1> to vector<8x8x4xi32>
    %4 = arith.sitofp %3 : vector<8x8x4xi32> to vector<8x8x4xf32>
    %c0 = arith.constant 0 : index
    %c0_0 = arith.constant 0 : index
    %c0_1 = arith.constant 0 : index
    %5 = vector.load %arg3[%c0, %c0_0, %c0_1] : memref<8x8x4xf32, #tpu.memory_space<vmem>>, vector<8x8x4xf32>
    %6 = arith.mulf %5, %4 : vector<8x8x4xf32>
    %cst = arith.constant dense<0.000000e+00> : vector<8x4xf32>
    %7 = vector.multi_reduction <add>, %6, %cst [0] : vector<8x8x4xf32> to vector<8x4xf32>
    %cst_2 = arith.constant 1.000000e+00 : f32
    %8 = vector.broadcast %cst_2 : f32 to vector<8x8x4xf32>
    %9 = arith.subf %8, %4 : vector<8x8x4xf32>
    %10 = arith.mulf %5, %9 : vector<8x8x4xf32>
    %cst_3 = arith.constant 0.000000e+00 : f32
    %11 = vector.broadcast %cst_3 : f32 to vector<8x4xf32>
    %12 = arith.maximumf %7, %11 : vector<8x4xf32>
    %13 = math.absf %10 : vector<8x8x4xf32>
    %cst_4 = arith.constant dense<0.000000e+00> : vector<8x4xf32>
    %14 = vector.multi_reduction <add>, %13, %cst_4 [0] : vector<8x8x4xf32> to vector<8x4xf32>
    %15 = arith.addf %12, %14 : vector<8x4xf32>
    %16 = vector.shape_cast %15 : vector<8x4xf32> to vector<1x8x4xf32>
    %17 = vector.broadcast %16 : vector<1x8x4xf32> to vector<8x8x4xf32>
    %18 = arith.mulf %4, %17 : vector<8x8x4xf32>
    %19 = arith.addf %10, %18 : vector<8x8x4xf32>
    %c0_5 = arith.constant 0 : index
    %c0_6 = arith.constant 0 : index
    %c0_7 = arith.constant 0 : index
    %20 = vector.load %arg4[%c0_5, %c0_6, %c0_7] : memref<8x8x4xf32, #tpu.memory_space<vmem>>, vector<8x8x4xf32>
    %21 = arith.mulf %20, %4 : vector<8x8x4xf32>
    %cst_8 = arith.constant dense<0.000000e+00> : vector<8x4xf32>
    %22 = vector.multi_reduction <add>, %21, %cst_8 [0] : vector<8x8x4xf32> to vector<8x4xf32>
    %cst_9 = arith.constant 1.000000e+00 : f32
    %23 = vector.broadcast %cst_9 : f32 to vector<8x8x4xf32>
    %24 = arith.subf %23, %4 : vector<8x8x4xf32>
    %25 = arith.mulf %20, %24 : vector<8x8x4xf32>
    %cst_10 = arith.constant 0.000000e+00 : f32
    %26 = vector.broadcast %cst_10 : f32 to vector<8x4xf32>
    %27 = arith.maximumf %22, %26 : vector<8x4xf32>
    %28 = math.absf %25 : vector<8x8x4xf32>
    %cst_11 = arith.constant dense<0.000000e+00> : vector<8x4xf32>
    %29 = vector.multi_reduction <add>, %28, %cst_11 [0] : vector<8x8x4xf32> to vector<8x4xf32>
    %30 = arith.addf %27, %29 : vector<8x4xf32>
    %31 = vector.shape_cast %30 : vector<8x4xf32> to vector<1x8x4xf32>
    %32 = vector.broadcast %31 : vector<1x8x4xf32> to vector<8x8x4xf32>
    %33 = arith.mulf %4, %32 : vector<8x8x4xf32>
    %34 = arith.addf %25, %33 : vector<8x8x4xf32>
    %35 = arith.addf %19, %34 : vector<8x8x4xf32>
    %c0_12 = arith.constant 0 : index
    %c0_13 = arith.constant 0 : index
    %36 = vector.load %arg5[%c0_12, %c0_13] : memref<4x128xf32, #tpu.memory_space<vmem>>, vector<4x128xf32>
    %37 = vector.extract_strided_slice %35 {offsets = [0, 0, 0], sizes = [1, 8, 4], strides = [1, 1, 1]} : vector<8x8x4xf32> to vector<1x8x4xf32>
    %38 = vector.shape_cast %37 : vector<1x8x4xf32> to vector<8x4xf32>
    %39 = vector.extract_strided_slice %35 {offsets = [1, 0, 0], sizes = [1, 8, 4], strides = [1, 1, 1]} : vector<8x8x4xf32> to vector<1x8x4xf32>
    %40 = vector.shape_cast %39 : vector<1x8x4xf32> to vector<8x4xf32>
    %41 = vector.extract_strided_slice %35 {offsets = [2, 0, 0], sizes = [1, 8, 4], strides = [1, 1, 1]} : vector<8x8x4xf32> to vector<1x8x4xf32>
    %42 = vector.shape_cast %41 : vector<1x8x4xf32> to vector<8x4xf32>
    %43 = vector.extract_strided_slice %35 {offsets = [3, 0, 0], sizes = [1, 8, 4], strides = [1, 1, 1]} : vector<8x8x4xf32> to vector<1x8x4xf32>
    %44 = vector.shape_cast %43 : vector<1x8x4xf32> to vector<8x4xf32>
    %45 = vector.extract_strided_slice %35 {offsets = [4, 0, 0], sizes = [1, 8, 4], strides = [1, 1, 1]} : vector<8x8x4xf32> to vector<1x8x4xf32>
    %46 = vector.shape_cast %45 : vector<1x8x4xf32> to vector<8x4xf32>
    %47 = vector.extract_strided_slice %35 {offsets = [5, 0, 0], sizes = [1, 8, 4], strides = [1, 1, 1]} : vector<8x8x4xf32> to vector<1x8x4xf32>
    %48 = vector.shape_cast %47 : vector<1x8x4xf32> to vector<8x4xf32>
    %49 = vector.extract_strided_slice %35 {offsets = [6, 0, 0], sizes = [1, 8, 4], strides = [1, 1, 1]} : vector<8x8x4xf32> to vector<1x8x4xf32>
    %50 = vector.shape_cast %49 : vector<1x8x4xf32> to vector<8x4xf32>
    %51 = vector.extract_strided_slice %35 {offsets = [7, 0, 0], sizes = [1, 8, 4], strides = [1, 1, 1]} : vector<8x8x4xf32> to vector<1x8x4xf32>
    %52 = vector.shape_cast %51 : vector<1x8x4xf32> to vector<8x4xf32>
    %53 = vector.extract_strided_slice %34 {offsets = [0, 0, 0], sizes = [1, 8, 4], strides = [1, 1, 1]} : vector<8x8x4xf32> to vector<1x8x4xf32>
    %54 = vector.shape_cast %53 : vector<1x8x4xf32> to vector<8x4xf32>
    %55 = vector.extract_strided_slice %34 {offsets = [1, 0, 0], sizes = [1, 8, 4], strides = [1, 1, 1]} : vector<8x8x4xf32> to vector<1x8x4xf32>
    %56 = vector.shape_cast %55 : vector<1x8x4xf32> to vector<8x4xf32>
    %57 = vector.extract_strided_slice %34 {offsets = [2, 0, 0], sizes = [1, 8, 4], strides = [1, 1, 1]} : vector<8x8x4xf32> to vector<1x8x4xf32>
    %58 = vector.shape_cast %57 : vector<1x8x4xf32> to vector<8x4xf32>
    %59 = vector.extract_strided_slice %34 {offsets = [3, 0, 0], sizes = [1, 8, 4], strides = [1, 1, 1]} : vector<8x8x4xf32> to vector<1x8x4xf32>
    %60 = vector.shape_cast %59 : vector<1x8x4xf32> to vector<8x4xf32>
    %61 = vector.extract_strided_slice %34 {offsets = [4, 0, 0], sizes = [1, 8, 4], strides = [1, 1, 1]} : vector<8x8x4xf32> to vector<1x8x4xf32>
    %62 = vector.shape_cast %61 : vector<1x8x4xf32> to vector<8x4xf32>
    %63 = vector.extract_strided_slice %34 {offsets = [5, 0, 0], sizes = [1, 8, 4], strides = [1, 1, 1]} : vector<8x8x4xf32> to vector<1x8x4xf32>
    %64 = vector.shape_cast %63 : vector<1x8x4xf32> to vector<8x4xf32>
    %65 = vector.extract_strided_slice %34 {offsets = [6, 0, 0], sizes = [1, 8, 4], strides = [1, 1, 1]} : vector<8x8x4xf32> to vector<1x8x4xf32>
    %66 = vector.shape_cast %65 : vector<1x8x4xf32> to vector<8x4xf32>
    %67 = vector.extract_strided_slice %34 {offsets = [7, 0, 0], sizes = [1, 8, 4], strides = [1, 1, 1]} : vector<8x8x4xf32> to vector<1x8x4xf32>
    %68 = vector.shape_cast %67 : vector<1x8x4xf32> to vector<8x4xf32>
    %69 = tpu.concatenate %38, %40, %42, %44, %46, %48, %50, %52, %54, %56, %58, %60, %62, %64, %66, %68 in 0 : vector<8x4xf32>, vector<8x4xf32>, vector<8x4xf32>, vector<8x4xf32>, vector<8x4xf32>, vector<8x4xf32>, vector<8x4xf32>, vector<8x4xf32>, vector<8x4xf32>, vector<8x4xf32>, vector<8x4xf32>, vector<8x4xf32>, vector<8x4xf32>, vector<8x4xf32>, vector<8x4xf32>, vector<8x4xf32> -> vector<128x4xf32>
    %cst_14 = arith.constant dense<0.000000e+00> : vector<128x128xf32>
    %70 = tpu.matmul %69, %36, %cst_14 {dimension_numbers = #tpu.dot_dimension_numbers<[1], [0], [0], [1], [0, 0, 1, 1], [], []>} : vector<128x4xf32>, vector<4x128xf32>, vector<128x128xf32> -> vector<128x128xf32>
    %71 = vector.extract_strided_slice %70 {offsets = [0, 0], sizes = [8, 128], strides = [1, 1]} : vector<128x128xf32> to vector<8x128xf32>
    %72 = vector.extract_strided_slice %70 {offsets = [8, 0], sizes = [8, 128], strides = [1, 1]} : vector<128x128xf32> to vector<8x128xf32>
    %73 = vector.extract_strided_slice %70 {offsets = [16, 0], sizes = [8, 128], strides = [1, 1]} : vector<128x128xf32> to vector<8x128xf32>
    %74 = vector.extract_strided_slice %70 {offsets = [24, 0], sizes = [8, 128], strides = [1, 1]} : vector<128x128xf32> to vector<8x128xf32>
    %75 = vector.extract_strided_slice %70 {offsets = [32, 0], sizes = [8, 128], strides = [1, 1]} : vector<128x128xf32> to vector<8x128xf32>
    %76 = vector.extract_strided_slice %70 {offsets = [40, 0], sizes = [8, 128], strides = [1, 1]} : vector<128x128xf32> to vector<8x128xf32>
    %77 = vector.extract_strided_slice %70 {offsets = [48, 0], sizes = [8, 128], strides = [1, 1]} : vector<128x128xf32> to vector<8x128xf32>
    %78 = vector.extract_strided_slice %70 {offsets = [56, 0], sizes = [8, 128], strides = [1, 1]} : vector<128x128xf32> to vector<8x128xf32>
    %79 = vector.extract_strided_slice %70 {offsets = [64, 0], sizes = [8, 128], strides = [1, 1]} : vector<128x128xf32> to vector<8x128xf32>
    %80 = vector.extract_strided_slice %70 {offsets = [72, 0], sizes = [8, 128], strides = [1, 1]} : vector<128x128xf32> to vector<8x128xf32>
    %81 = vector.extract_strided_slice %70 {offsets = [80, 0], sizes = [8, 128], strides = [1, 1]} : vector<128x128xf32> to vector<8x128xf32>
    %82 = vector.extract_strided_slice %70 {offsets = [88, 0], sizes = [8, 128], strides = [1, 1]} : vector<128x128xf32> to vector<8x128xf32>
    %83 = vector.extract_strided_slice %70 {offsets = [96, 0], sizes = [8, 128], strides = [1, 1]} : vector<128x128xf32> to vector<8x128xf32>
    %84 = vector.extract_strided_slice %70 {offsets = [104, 0], sizes = [8, 128], strides = [1, 1]} : vector<128x128xf32> to vector<8x128xf32>
    %85 = vector.extract_strided_slice %70 {offsets = [112, 0], sizes = [8, 128], strides = [1, 1]} : vector<128x128xf32> to vector<8x128xf32>
    %86 = vector.extract_strided_slice %70 {offsets = [120, 0], sizes = [8, 128], strides = [1, 1]} : vector<128x128xf32> to vector<8x128xf32>
    %87 = vector.extract_strided_slice %71 {offsets = [0, 0], sizes = [1, 128], strides = [1, 1]} : vector<8x128xf32> to vector<1x128xf32>
    %cst_15 = arith.constant 1.000000e+00 : f32
    %88 = vector.broadcast %cst_15 : f32 to vector<1x128xf32>
    %89 = arith.divf %88, %87 : vector<1x128xf32>
    %90 = vector.broadcast %89 : vector<1x128xf32> to vector<8x128xf32>
    %91 = arith.mulf %71, %90 : vector<8x128xf32>
    %92 = vector.broadcast %89 : vector<1x128xf32> to vector<8x128xf32>
    %93 = arith.mulf %79, %92 : vector<8x128xf32>
    %94 = vector.extract_strided_slice %72 {offsets = [0, 0], sizes = [1, 128], strides = [1, 1]} : vector<8x128xf32> to vector<1x128xf32>
    %95 = vector.broadcast %94 : vector<1x128xf32> to vector<8x128xf32>
    %96 = arith.mulf %95, %91 : vector<8x128xf32>
    %97 = arith.subf %72, %96 : vector<8x128xf32>
    %98 = vector.broadcast %94 : vector<1x128xf32> to vector<8x128xf32>
    %99 = arith.mulf %98, %93 : vector<8x128xf32>
    %100 = arith.subf %80, %99 : vector<8x128xf32>
    %101 = vector.extract_strided_slice %73 {offsets = [0, 0], sizes = [1, 128], strides = [1, 1]} : vector<8x128xf32> to vector<1x128xf32>
    %102 = vector.broadcast %101 : vector<1x128xf32> to vector<8x128xf32>
    %103 = arith.mulf %102, %91 : vector<8x128xf32>
    %104 = arith.subf %73, %103 : vector<8x128xf32>
    %105 = vector.broadcast %101 : vector<1x128xf32> to vector<8x128xf32>
    %106 = arith.mulf %105, %93 : vector<8x128xf32>
    %107 = arith.subf %81, %106 : vector<8x128xf32>
    %108 = vector.extract_strided_slice %74 {offsets = [0, 0], sizes = [1, 128], strides = [1, 1]} : vector<8x128xf32> to vector<1x128xf32>
    %109 = vector.broadcast %108 : vector<1x128xf32> to vector<8x128xf32>
    %110 = arith.mulf %109, %91 : vector<8x128xf32>
    %111 = arith.subf %74, %110 : vector<8x128xf32>
    %112 = vector.broadcast %108 : vector<1x128xf32> to vector<8x128xf32>
    %113 = arith.mulf %112, %93 : vector<8x128xf32>
    %114 = arith.subf %82, %113 : vector<8x128xf32>
    %115 = vector.extract_strided_slice %75 {offsets = [0, 0], sizes = [1, 128], strides = [1, 1]} : vector<8x128xf32> to vector<1x128xf32>
    %116 = vector.broadcast %115 : vector<1x128xf32> to vector<8x128xf32>
    %117 = arith.mulf %116, %91 : vector<8x128xf32>
    %118 = arith.subf %75, %117 : vector<8x128xf32>
    %119 = vector.broadcast %115 : vector<1x128xf32> to vector<8x128xf32>
    %120 = arith.mulf %119, %93 : vector<8x128xf32>
    %121 = arith.subf %83, %120 : vector<8x128xf32>
    %122 = vector.extract_strided_slice %76 {offsets = [0, 0], sizes = [1, 128], strides = [1, 1]} : vector<8x128xf32> to vector<1x128xf32>
    %123 = vector.broadcast %122 : vector<1x128xf32> to vector<8x128xf32>
    %124 = arith.mulf %123, %91 : vector<8x128xf32>
    %125 = arith.subf %76, %124 : vector<8x128xf32>
    %126 = vector.broadcast %122 : vector<1x128xf32> to vector<8x128xf32>
    %127 = arith.mulf %126, %93 : vector<8x128xf32>
    %128 = arith.subf %84, %127 : vector<8x128xf32>
    %129 = vector.extract_strided_slice %77 {offsets = [0, 0], sizes = [1, 128], strides = [1, 1]} : vector<8x128xf32> to vector<1x128xf32>
    %130 = vector.broadcast %129 : vector<1x128xf32> to vector<8x128xf32>
    %131 = arith.mulf %130, %91 : vector<8x128xf32>
    %132 = arith.subf %77, %131 : vector<8x128xf32>
    %133 = vector.broadcast %129 : vector<1x128xf32> to vector<8x128xf32>
    %134 = arith.mulf %133, %93 : vector<8x128xf32>
    %135 = arith.subf %85, %134 : vector<8x128xf32>
    %136 = vector.extract_strided_slice %78 {offsets = [0, 0], sizes = [1, 128], strides = [1, 1]} : vector<8x128xf32> to vector<1x128xf32>
    %137 = vector.broadcast %136 : vector<1x128xf32> to vector<8x128xf32>
    %138 = arith.mulf %137, %91 : vector<8x128xf32>
    %139 = arith.subf %78, %138 : vector<8x128xf32>
    %140 = vector.broadcast %136 : vector<1x128xf32> to vector<8x128xf32>
    %141 = arith.mulf %140, %93 : vector<8x128xf32>
    %142 = arith.subf %86, %141 : vector<8x128xf32>
    %143 = vector.extract_strided_slice %97 {offsets = [1, 0], sizes = [1, 128], strides = [1, 1]} : vector<8x128xf32> to vector<1x128xf32>
    %cst_16 = arith.constant 1.000000e+00 : f32
    %144 = vector.broadcast %cst_16 : f32 to vector<1x128xf32>
    %145 = arith.divf %144, %143 : vector<1x128xf32>
    %146 = vector.broadcast %145 : vector<1x128xf32> to vector<8x128xf32>
    %147 = arith.mulf %97, %146 : vector<8x128xf32>
    %148 = vector.broadcast %145 : vector<1x128xf32> to vector<8x128xf32>
    %149 = arith.mulf %100, %148 : vector<8x128xf32>
    %150 = vector.extract_strided_slice %91 {offsets = [1, 0], sizes = [1, 128], strides = [1, 1]} : vector<8x128xf32> to vector<1x128xf32>
    %151 = vector.broadcast %150 : vector<1x128xf32> to vector<8x128xf32>
    %152 = arith.mulf %151, %147 : vector<8x128xf32>
    %153 = arith.subf %91, %152 : vector<8x128xf32>
    %154 = vector.broadcast %150 : vector<1x128xf32> to vector<8x128xf32>
    %155 = arith.mulf %154, %149 : vector<8x128xf32>
    %156 = arith.subf %93, %155 : vector<8x128xf32>
    %157 = vector.extract_strided_slice %104 {offsets = [1, 0], sizes = [1, 128], strides = [1, 1]} : vector<8x128xf32> to vector<1x128xf32>
    %158 = vector.broadcast %157 : vector<1x128xf32> to vector<8x128xf32>
    %159 = arith.mulf %158, %147 : vector<8x128xf32>
    %160 = arith.subf %104, %159 : vector<8x128xf32>
    %161 = vector.broadcast %157 : vector<1x128xf32> to vector<8x128xf32>
    %162 = arith.mulf %161, %149 : vector<8x128xf32>
    %163 = arith.subf %107, %162 : vector<8x128xf32>
    %164 = vector.extract_strided_slice %111 {offsets = [1, 0], sizes = [1, 128], strides = [1, 1]} : vector<8x128xf32> to vector<1x128xf32>
    %165 = vector.broadcast %164 : vector<1x128xf32> to vector<8x128xf32>
    %166 = arith.mulf %165, %147 : vector<8x128xf32>
    %167 = arith.subf %111, %166 : vector<8x128xf32>
    %168 = vector.broadcast %164 : vector<1x128xf32> to vector<8x128xf32>
    %169 = arith.mulf %168, %149 : vector<8x128xf32>
    %170 = arith.subf %114, %169 : vector<8x128xf32>
    %171 = vector.extract_strided_slice %118 {offsets = [1, 0], sizes = [1, 128], strides = [1, 1]} : vector<8x128xf32> to vector<1x128xf32>
    %172 = vector.broadcast %171 : vector<1x128xf32> to vector<8x128xf32>
    %173 = arith.mulf %172, %147 : vector<8x128xf32>
    %174 = arith.subf %118, %173 : vector<8x128xf32>
    %175 = vector.broadcast %171 : vector<1x128xf32> to vector<8x128xf32>
    %176 = arith.mulf %175, %149 : vector<8x128xf32>
    %177 = arith.subf %121, %176 : vector<8x128xf32>
    %178 = vector.extract_strided_slice %125 {offsets = [1, 0], sizes = [1, 128], strides = [1, 1]} : vector<8x128xf32> to vector<1x128xf32>
    %179 = vector.broadcast %178 : vector<1x128xf32> to vector<8x128xf32>
    %180 = arith.mulf %179, %147 : vector<8x128xf32>
    %181 = arith.subf %125, %180 : vector<8x128xf32>
    %182 = vector.broadcast %178 : vector<1x128xf32> to vector<8x128xf32>
    %183 = arith.mulf %182, %149 : vector<8x128xf32>
    %184 = arith.subf %128, %183 : vector<8x128xf32>
    %185 = vector.extract_strided_slice %132 {offsets = [1, 0], sizes = [1, 128], strides = [1, 1]} : vector<8x128xf32> to vector<1x128xf32>
    %186 = vector.broadcast %185 : vector<1x128xf32> to vector<8x128xf32>
    %187 = arith.mulf %186, %147 : vector<8x128xf32>
    %188 = arith.subf %132, %187 : vector<8x128xf32>
    %189 = vector.broadcast %185 : vector<1x128xf32> to vector<8x128xf32>
    %190 = arith.mulf %189, %149 : vector<8x128xf32>
    %191 = arith.subf %135, %190 : vector<8x128xf32>
    %192 = vector.extract_strided_slice %139 {offsets = [1, 0], sizes = [1, 128], strides = [1, 1]} : vector<8x128xf32> to vector<1x128xf32>
    %193 = vector.broadcast %192 : vector<1x128xf32> to vector<8x128xf32>
    %194 = arith.mulf %193, %147 : vector<8x128xf32>
    %195 = arith.subf %139, %194 : vector<8x128xf32>
    %196 = vector.broadcast %192 : vector<1x128xf32> to vector<8x128xf32>
    %197 = arith.mulf %196, %149 : vector<8x128xf32>
    %198 = arith.subf %142, %197 : vector<8x128xf32>
    %199 = vector.extract_strided_slice %160 {offsets = [2, 0], sizes = [1, 128], strides = [1, 1]} : vector<8x128xf32> to vector<1x128xf32>
    %cst_17 = arith.constant 1.000000e+00 : f32
    %200 = vector.broadcast %cst_17 : f32 to vector<1x128xf32>
    %201 = arith.divf %200, %199 : vector<1x128xf32>
    %202 = vector.broadcast %201 : vector<1x128xf32> to vector<8x128xf32>
    %203 = arith.mulf %160, %202 : vector<8x128xf32>
    %204 = vector.broadcast %201 : vector<1x128xf32> to vector<8x128xf32>
    %205 = arith.mulf %163, %204 : vector<8x128xf32>
    %206 = vector.extract_strided_slice %153 {offsets = [2, 0], sizes = [1, 128], strides = [1, 1]} : vector<8x128xf32> to vector<1x128xf32>
    %207 = vector.broadcast %206 : vector<1x128xf32> to vector<8x128xf32>
    %208 = arith.mulf %207, %203 : vector<8x128xf32>
    %209 = arith.subf %153, %208 : vector<8x128xf32>
    %210 = vector.broadcast %206 : vector<1x128xf32> to vector<8x128xf32>
    %211 = arith.mulf %210, %205 : vector<8x128xf32>
    %212 = arith.subf %156, %211 : vector<8x128xf32>
    %213 = vector.extract_strided_slice %147 {offsets = [2, 0], sizes = [1, 128], strides = [1, 1]} : vector<8x128xf32> to vector<1x128xf32>
    %214 = vector.broadcast %213 : vector<1x128xf32> to vector<8x128xf32>
    %215 = arith.mulf %214, %203 : vector<8x128xf32>
    %216 = arith.subf %147, %215 : vector<8x128xf32>
    %217 = vector.broadcast %213 : vector<1x128xf32> to vector<8x128xf32>
    %218 = arith.mulf %217, %205 : vector<8x128xf32>
    %219 = arith.subf %149, %218 : vector<8x128xf32>
    %220 = vector.extract_strided_slice %167 {offsets = [2, 0], sizes = [1, 128], strides = [1, 1]} : vector<8x128xf32> to vector<1x128xf32>
    %221 = vector.broadcast %220 : vector<1x128xf32> to vector<8x128xf32>
    %222 = arith.mulf %221, %203 : vector<8x128xf32>
    %223 = arith.subf %167, %222 : vector<8x128xf32>
    %224 = vector.broadcast %220 : vector<1x128xf32> to vector<8x128xf32>
    %225 = arith.mulf %224, %205 : vector<8x128xf32>
    %226 = arith.subf %170, %225 : vector<8x128xf32>
    %227 = vector.extract_strided_slice %174 {offsets = [2, 0], sizes = [1, 128], strides = [1, 1]} : vector<8x128xf32> to vector<1x128xf32>
    %228 = vector.broadcast %227 : vector<1x128xf32> to vector<8x128xf32>
    %229 = arith.mulf %228, %203 : vector<8x128xf32>
    %230 = arith.subf %174, %229 : vector<8x128xf32>
    %231 = vector.broadcast %227 : vector<1x128xf32> to vector<8x128xf32>
    %232 = arith.mulf %231, %205 : vector<8x128xf32>
    %233 = arith.subf %177, %232 : vector<8x128xf32>
    %234 = vector.extract_strided_slice %181 {offsets = [2, 0], sizes = [1, 128], strides = [1, 1]} : vector<8x128xf32> to vector<1x128xf32>
    %235 = vector.broadcast %234 : vector<1x128xf32> to vector<8x128xf32>
    %236 = arith.mulf %235, %203 : vector<8x128xf32>
    %237 = arith.subf %181, %236 : vector<8x128xf32>
    %238 = vector.broadcast %234 : vector<1x128xf32> to vector<8x128xf32>
    %239 = arith.mulf %238, %205 : vector<8x128xf32>
    %240 = arith.subf %184, %239 : vector<8x128xf32>
    %241 = vector.extract_strided_slice %188 {offsets = [2, 0], sizes = [1, 128], strides = [1, 1]} : vector<8x128xf32> to vector<1x128xf32>
    %242 = vector.broadcast %241 : vector<1x128xf32> to vector<8x128xf32>
    %243 = arith.mulf %242, %203 : vector<8x128xf32>
    %244 = arith.subf %188, %243 : vector<8x128xf32>
    %245 = vector.broadcast %241 : vector<1x128xf32> to vector<8x128xf32>
    %246 = arith.mulf %245, %205 : vector<8x128xf32>
    %247 = arith.subf %191, %246 : vector<8x128xf32>
    %248 = vector.extract_strided_slice %195 {offsets = [2, 0], sizes = [1, 128], strides = [1, 1]} : vector<8x128xf32> to vector<1x128xf32>
    %249 = vector.broadcast %248 : vector<1x128xf32> to vector<8x128xf32>
    %250 = arith.mulf %249, %203 : vector<8x128xf32>
    %251 = arith.subf %195, %250 : vector<8x128xf32>
    %252 = vector.broadcast %248 : vector<1x128xf32> to vector<8x128xf32>
    %253 = arith.mulf %252, %205 : vector<8x128xf32>
    %254 = arith.subf %198, %253 : vector<8x128xf32>
    %255 = vector.extract_strided_slice %223 {offsets = [3, 0], sizes = [1, 128], strides = [1, 1]} : vector<8x128xf32> to vector<1x128xf32>
    %cst_18 = arith.constant 1.000000e+00 : f32
    %256 = vector.broadcast %cst_18 : f32 to vector<1x128xf32>
    %257 = arith.divf %256, %255 : vector<1x128xf32>
    %258 = vector.broadcast %257 : vector<1x128xf32> to vector<8x128xf32>
    %259 = arith.mulf %223, %258 : vector<8x128xf32>
    %260 = vector.broadcast %257 : vector<1x128xf32> to vector<8x128xf32>
    %261 = arith.mulf %226, %260 : vector<8x128xf32>
    %262 = vector.extract_strided_slice %209 {offsets = [3, 0], sizes = [1, 128], strides = [1, 1]} : vector<8x128xf32> to vector<1x128xf32>
    %263 = vector.broadcast %262 : vector<1x128xf32> to vector<8x128xf32>
    %264 = arith.mulf %263, %259 : vector<8x128xf32>
    %265 = arith.subf %209, %264 : vector<8x128xf32>
    %266 = vector.broadcast %262 : vector<1x128xf32> to vector<8x128xf32>
    %267 = arith.mulf %266, %261 : vector<8x128xf32>
    %268 = arith.subf %212, %267 : vector<8x128xf32>
    %269 = vector.extract_strided_slice %216 {offsets = [3, 0], sizes = [1, 128], strides = [1, 1]} : vector<8x128xf32> to vector<1x128xf32>
    %270 = vector.broadcast %269 : vector<1x128xf32> to vector<8x128xf32>
    %271 = arith.mulf %270, %259 : vector<8x128xf32>
    %272 = arith.subf %216, %271 : vector<8x128xf32>
    %273 = vector.broadcast %269 : vector<1x128xf32> to vector<8x128xf32>
    %274 = arith.mulf %273, %261 : vector<8x128xf32>
    %275 = arith.subf %219, %274 : vector<8x128xf32>
    %276 = vector.extract_strided_slice %203 {offsets = [3, 0], sizes = [1, 128], strides = [1, 1]} : vector<8x128xf32> to vector<1x128xf32>
    %277 = vector.broadcast %276 : vector<1x128xf32> to vector<8x128xf32>
    %278 = arith.mulf %277, %259 : vector<8x128xf32>
    %279 = arith.subf %203, %278 : vector<8x128xf32>
    %280 = vector.broadcast %276 : vector<1x128xf32> to vector<8x128xf32>
    %281 = arith.mulf %280, %261 : vector<8x128xf32>
    %282 = arith.subf %205, %281 : vector<8x128xf32>
    %283 = vector.extract_strided_slice %230 {offsets = [3, 0], sizes = [1, 128], strides = [1, 1]} : vector<8x128xf32> to vector<1x128xf32>
    %284 = vector.broadcast %283 : vector<1x128xf32> to vector<8x128xf32>
    %285 = arith.mulf %284, %259 : vector<8x128xf32>
    %286 = arith.subf %230, %285 : vector<8x128xf32>
    %287 = vector.broadcast %283 : vector<1x128xf32> to vector<8x128xf32>
    %288 = arith.mulf %287, %261 : vector<8x128xf32>
    %289 = arith.subf %233, %288 : vector<8x128xf32>
    %290 = vector.extract_strided_slice %237 {offsets = [3, 0], sizes = [1, 128], strides = [1, 1]} : vector<8x128xf32> to vector<1x128xf32>
    %291 = vector.broadcast %290 : vector<1x128xf32> to vector<8x128xf32>
    %292 = arith.mulf %291, %259 : vector<8x128xf32>
    %293 = arith.subf %237, %292 : vector<8x128xf32>
    %294 = vector.broadcast %290 : vector<1x128xf32> to vector<8x128xf32>
    %295 = arith.mulf %294, %261 : vector<8x128xf32>
    %296 = arith.subf %240, %295 : vector<8x128xf32>
    %297 = vector.extract_strided_slice %244 {offsets = [3, 0], sizes = [1, 128], strides = [1, 1]} : vector<8x128xf32> to vector<1x128xf32>
    %298 = vector.broadcast %297 : vector<1x128xf32> to vector<8x128xf32>
    %299 = arith.mulf %298, %259 : vector<8x128xf32>
    %300 = arith.subf %244, %299 : vector<8x128xf32>
    %301 = vector.broadcast %297 : vector<1x128xf32> to vector<8x128xf32>
    %302 = arith.mulf %301, %261 : vector<8x128xf32>
    %303 = arith.subf %247, %302 : vector<8x128xf32>
    %304 = vector.extract_strided_slice %251 {offsets = [3, 0], sizes = [1, 128], strides = [1, 1]} : vector<8x128xf32> to vector<1x128xf32>
    %305 = vector.broadcast %304 : vector<1x128xf32> to vector<8x128xf32>
    %306 = arith.mulf %305, %259 : vector<8x128xf32>
    %307 = arith.subf %251, %306 : vector<8x128xf32>
    %308 = vector.broadcast %304 : vector<1x128xf32> to vector<8x128xf32>
    %309 = arith.mulf %308, %261 : vector<8x128xf32>
    %310 = arith.subf %254, %309 : vector<8x128xf32>
    %311 = vector.extract_strided_slice %286 {offsets = [4, 0], sizes = [1, 128], strides = [1, 1]} : vector<8x128xf32> to vector<1x128xf32>
    %cst_19 = arith.constant 1.000000e+00 : f32
    %312 = vector.broadcast %cst_19 : f32 to vector<1x128xf32>
    %313 = arith.divf %312, %311 : vector<1x128xf32>
    %314 = vector.broadcast %313 : vector<1x128xf32> to vector<8x128xf32>
    %315 = arith.mulf %286, %314 : vector<8x128xf32>
    %316 = vector.broadcast %313 : vector<1x128xf32> to vector<8x128xf32>
    %317 = arith.mulf %289, %316 : vector<8x128xf32>
    %318 = vector.extract_strided_slice %265 {offsets = [4, 0], sizes = [1, 128], strides = [1, 1]} : vector<8x128xf32> to vector<1x128xf32>
    %319 = vector.broadcast %318 : vector<1x128xf32> to vector<8x128xf32>
    %320 = arith.mulf %319, %315 : vector<8x128xf32>
    %321 = arith.subf %265, %320 : vector<8x128xf32>
    %322 = vector.broadcast %318 : vector<1x128xf32> to vector<8x128xf32>
    %323 = arith.mulf %322, %317 : vector<8x128xf32>
    %324 = arith.subf %268, %323 : vector<8x128xf32>
    %325 = vector.extract_strided_slice %272 {offsets = [4, 0], sizes = [1, 128], strides = [1, 1]} : vector<8x128xf32> to vector<1x128xf32>
    %326 = vector.broadcast %325 : vector<1x128xf32> to vector<8x128xf32>
    %327 = arith.mulf %326, %315 : vector<8x128xf32>
    %328 = arith.subf %272, %327 : vector<8x128xf32>
    %329 = vector.broadcast %325 : vector<1x128xf32> to vector<8x128xf32>
    %330 = arith.mulf %329, %317 : vector<8x128xf32>
    %331 = arith.subf %275, %330 : vector<8x128xf32>
    %332 = vector.extract_strided_slice %279 {offsets = [4, 0], sizes = [1, 128], strides = [1, 1]} : vector<8x128xf32> to vector<1x128xf32>
    %333 = vector.broadcast %332 : vector<1x128xf32> to vector<8x128xf32>
    %334 = arith.mulf %333, %315 : vector<8x128xf32>
    %335 = arith.subf %279, %334 : vector<8x128xf32>
    %336 = vector.broadcast %332 : vector<1x128xf32> to vector<8x128xf32>
    %337 = arith.mulf %336, %317 : vector<8x128xf32>
    %338 = arith.subf %282, %337 : vector<8x128xf32>
    %339 = vector.extract_strided_slice %259 {offsets = [4, 0], sizes = [1, 128], strides = [1, 1]} : vector<8x128xf32> to vector<1x128xf32>
    %340 = vector.broadcast %339 : vector<1x128xf32> to vector<8x128xf32>
    %341 = arith.mulf %340, %315 : vector<8x128xf32>
    %342 = arith.subf %259, %341 : vector<8x128xf32>
    %343 = vector.broadcast %339 : vector<1x128xf32> to vector<8x128xf32>
    %344 = arith.mulf %343, %317 : vector<8x128xf32>
    %345 = arith.subf %261, %344 : vector<8x128xf32>
    %346 = vector.extract_strided_slice %293 {offsets = [4, 0], sizes = [1, 128], strides = [1, 1]} : vector<8x128xf32> to vector<1x128xf32>
    %347 = vector.broadcast %346 : vector<1x128xf32> to vector<8x128xf32>
    %348 = arith.mulf %347, %315 : vector<8x128xf32>
    %349 = arith.subf %293, %348 : vector<8x128xf32>
    %350 = vector.broadcast %346 : vector<1x128xf32> to vector<8x128xf32>
    %351 = arith.mulf %350, %317 : vector<8x128xf32>
    %352 = arith.subf %296, %351 : vector<8x128xf32>
    %353 = vector.extract_strided_slice %300 {offsets = [4, 0], sizes = [1, 128], strides = [1, 1]} : vector<8x128xf32> to vector<1x128xf32>
    %354 = vector.broadcast %353 : vector<1x128xf32> to vector<8x128xf32>
    %355 = arith.mulf %354, %315 : vector<8x128xf32>
    %356 = arith.subf %300, %355 : vector<8x128xf32>
    %357 = vector.broadcast %353 : vector<1x128xf32> to vector<8x128xf32>
    %358 = arith.mulf %357, %317 : vector<8x128xf32>
    %359 = arith.subf %303, %358 : vector<8x128xf32>
    %360 = vector.extract_strided_slice %307 {offsets = [4, 0], sizes = [1, 128], strides = [1, 1]} : vector<8x128xf32> to vector<1x128xf32>
    %361 = vector.broadcast %360 : vector<1x128xf32> to vector<8x128xf32>
    %362 = arith.mulf %361, %315 : vector<8x128xf32>
    %363 = arith.subf %307, %362 : vector<8x128xf32>
    %364 = vector.broadcast %360 : vector<1x128xf32> to vector<8x128xf32>
    %365 = arith.mulf %364, %317 : vector<8x128xf32>
    %366 = arith.subf %310, %365 : vector<8x128xf32>
    %367 = vector.extract_strided_slice %349 {offsets = [5, 0], sizes = [1, 128], strides = [1, 1]} : vector<8x128xf32> to vector<1x128xf32>
    %cst_20 = arith.constant 1.000000e+00 : f32
    %368 = vector.broadcast %cst_20 : f32 to vector<1x128xf32>
    %369 = arith.divf %368, %367 : vector<1x128xf32>
    %370 = vector.broadcast %369 : vector<1x128xf32> to vector<8x128xf32>
    %371 = arith.mulf %349, %370 : vector<8x128xf32>
    %372 = vector.broadcast %369 : vector<1x128xf32> to vector<8x128xf32>
    %373 = arith.mulf %352, %372 : vector<8x128xf32>
    %374 = vector.extract_strided_slice %321 {offsets = [5, 0], sizes = [1, 128], strides = [1, 1]} : vector<8x128xf32> to vector<1x128xf32>
    %375 = vector.broadcast %374 : vector<1x128xf32> to vector<8x128xf32>
    %376 = arith.mulf %375, %371 : vector<8x128xf32>
    %377 = arith.subf %321, %376 : vector<8x128xf32>
    %378 = vector.broadcast %374 : vector<1x128xf32> to vector<8x128xf32>
    %379 = arith.mulf %378, %373 : vector<8x128xf32>
    %380 = arith.subf %324, %379 : vector<8x128xf32>
    %381 = vector.extract_strided_slice %328 {offsets = [5, 0], sizes = [1, 128], strides = [1, 1]} : vector<8x128xf32> to vector<1x128xf32>
    %382 = vector.broadcast %381 : vector<1x128xf32> to vector<8x128xf32>
    %383 = arith.mulf %382, %371 : vector<8x128xf32>
    %384 = arith.subf %328, %383 : vector<8x128xf32>
    %385 = vector.broadcast %381 : vector<1x128xf32> to vector<8x128xf32>
    %386 = arith.mulf %385, %373 : vector<8x128xf32>
    %387 = arith.subf %331, %386 : vector<8x128xf32>
    %388 = vector.extract_strided_slice %335 {offsets = [5, 0], sizes = [1, 128], strides = [1, 1]} : vector<8x128xf32> to vector<1x128xf32>
    %389 = vector.broadcast %388 : vector<1x128xf32> to vector<8x128xf32>
    %390 = arith.mulf %389, %371 : vector<8x128xf32>
    %391 = arith.subf %335, %390 : vector<8x128xf32>
    %392 = vector.broadcast %388 : vector<1x128xf32> to vector<8x128xf32>
    %393 = arith.mulf %392, %373 : vector<8x128xf32>
    %394 = arith.subf %338, %393 : vector<8x128xf32>
    %395 = vector.extract_strided_slice %342 {offsets = [5, 0], sizes = [1, 128], strides = [1, 1]} : vector<8x128xf32> to vector<1x128xf32>
    %396 = vector.broadcast %395 : vector<1x128xf32> to vector<8x128xf32>
    %397 = arith.mulf %396, %371 : vector<8x128xf32>
    %398 = arith.subf %342, %397 : vector<8x128xf32>
    %399 = vector.broadcast %395 : vector<1x128xf32> to vector<8x128xf32>
    %400 = arith.mulf %399, %373 : vector<8x128xf32>
    %401 = arith.subf %345, %400 : vector<8x128xf32>
    %402 = vector.extract_strided_slice %315 {offsets = [5, 0], sizes = [1, 128], strides = [1, 1]} : vector<8x128xf32> to vector<1x128xf32>
    %403 = vector.broadcast %402 : vector<1x128xf32> to vector<8x128xf32>
    %404 = arith.mulf %403, %371 : vector<8x128xf32>
    %405 = arith.subf %315, %404 : vector<8x128xf32>
    %406 = vector.broadcast %402 : vector<1x128xf32> to vector<8x128xf32>
    %407 = arith.mulf %406, %373 : vector<8x128xf32>
    %408 = arith.subf %317, %407 : vector<8x128xf32>
    %409 = vector.extract_strided_slice %356 {offsets = [5, 0], sizes = [1, 128], strides = [1, 1]} : vector<8x128xf32> to vector<1x128xf32>
    %410 = vector.broadcast %409 : vector<1x128xf32> to vector<8x128xf32>
    %411 = arith.mulf %410, %371 : vector<8x128xf32>
    %412 = arith.subf %356, %411 : vector<8x128xf32>
    %413 = vector.broadcast %409 : vector<1x128xf32> to vector<8x128xf32>
    %414 = arith.mulf %413, %373 : vector<8x128xf32>
    %415 = arith.subf %359, %414 : vector<8x128xf32>
    %416 = vector.extract_strided_slice %363 {offsets = [5, 0], sizes = [1, 128], strides = [1, 1]} : vector<8x128xf32> to vector<1x128xf32>
    %417 = vector.broadcast %416 : vector<1x128xf32> to vector<8x128xf32>
    %418 = arith.mulf %417, %371 : vector<8x128xf32>
    %419 = arith.subf %363, %418 : vector<8x128xf32>
    %420 = vector.broadcast %416 : vector<1x128xf32> to vector<8x128xf32>
    %421 = arith.mulf %420, %373 : vector<8x128xf32>
    %422 = arith.subf %366, %421 : vector<8x128xf32>
    %423 = vector.extract_strided_slice %412 {offsets = [6, 0], sizes = [1, 128], strides = [1, 1]} : vector<8x128xf32> to vector<1x128xf32>
    %cst_21 = arith.constant 1.000000e+00 : f32
    %424 = vector.broadcast %cst_21 : f32 to vector<1x128xf32>
    %425 = arith.divf %424, %423 : vector<1x128xf32>
    %426 = vector.broadcast %425 : vector<1x128xf32> to vector<8x128xf32>
    %427 = arith.mulf %412, %426 : vector<8x128xf32>
    %428 = vector.broadcast %425 : vector<1x128xf32> to vector<8x128xf32>
    %429 = arith.mulf %415, %428 : vector<8x128xf32>
    %430 = vector.extract_strided_slice %377 {offsets = [6, 0], sizes = [1, 128], strides = [1, 1]} : vector<8x128xf32> to vector<1x128xf32>
    %431 = vector.broadcast %430 : vector<1x128xf32> to vector<8x128xf32>
    %432 = arith.mulf %431, %427 : vector<8x128xf32>
    %433 = arith.subf %377, %432 : vector<8x128xf32>
    %434 = vector.broadcast %430 : vector<1x128xf32> to vector<8x128xf32>
    %435 = arith.mulf %434, %429 : vector<8x128xf32>
    %436 = arith.subf %380, %435 : vector<8x128xf32>
    %437 = vector.extract_strided_slice %384 {offsets = [6, 0], sizes = [1, 128], strides = [1, 1]} : vector<8x128xf32> to vector<1x128xf32>
    %438 = vector.broadcast %437 : vector<1x128xf32> to vector<8x128xf32>
    %439 = arith.mulf %438, %427 : vector<8x128xf32>
    %440 = arith.subf %384, %439 : vector<8x128xf32>
    %441 = vector.broadcast %437 : vector<1x128xf32> to vector<8x128xf32>
    %442 = arith.mulf %441, %429 : vector<8x128xf32>
    %443 = arith.subf %387, %442 : vector<8x128xf32>
    %444 = vector.extract_strided_slice %391 {offsets = [6, 0], sizes = [1, 128], strides = [1, 1]} : vector<8x128xf32> to vector<1x128xf32>
    %445 = vector.broadcast %444 : vector<1x128xf32> to vector<8x128xf32>
    %446 = arith.mulf %445, %427 : vector<8x128xf32>
    %447 = arith.subf %391, %446 : vector<8x128xf32>
    %448 = vector.broadcast %444 : vector<1x128xf32> to vector<8x128xf32>
    %449 = arith.mulf %448, %429 : vector<8x128xf32>
    %450 = arith.subf %394, %449 : vector<8x128xf32>
    %451 = vector.extract_strided_slice %398 {offsets = [6, 0], sizes = [1, 128], strides = [1, 1]} : vector<8x128xf32> to vector<1x128xf32>
    %452 = vector.broadcast %451 : vector<1x128xf32> to vector<8x128xf32>
    %453 = arith.mulf %452, %427 : vector<8x128xf32>
    %454 = arith.subf %398, %453 : vector<8x128xf32>
    %455 = vector.broadcast %451 : vector<1x128xf32> to vector<8x128xf32>
    %456 = arith.mulf %455, %429 : vector<8x128xf32>
    %457 = arith.subf %401, %456 : vector<8x128xf32>
    %458 = vector.extract_strided_slice %405 {offsets = [6, 0], sizes = [1, 128], strides = [1, 1]} : vector<8x128xf32> to vector<1x128xf32>
    %459 = vector.broadcast %458 : vector<1x128xf32> to vector<8x128xf32>
    %460 = arith.mulf %459, %427 : vector<8x128xf32>
    %461 = arith.subf %405, %460 : vector<8x128xf32>
    %462 = vector.broadcast %458 : vector<1x128xf32> to vector<8x128xf32>
    %463 = arith.mulf %462, %429 : vector<8x128xf32>
    %464 = arith.subf %408, %463 : vector<8x128xf32>
    %465 = vector.extract_strided_slice %371 {offsets = [6, 0], sizes = [1, 128], strides = [1, 1]} : vector<8x128xf32> to vector<1x128xf32>
    %466 = vector.broadcast %465 : vector<1x128xf32> to vector<8x128xf32>
    %467 = arith.mulf %466, %427 : vector<8x128xf32>
    %468 = arith.subf %371, %467 : vector<8x128xf32>
    %469 = vector.broadcast %465 : vector<1x128xf32> to vector<8x128xf32>
    %470 = arith.mulf %469, %429 : vector<8x128xf32>
    %471 = arith.subf %373, %470 : vector<8x128xf32>
    %472 = vector.extract_strided_slice %419 {offsets = [6, 0], sizes = [1, 128], strides = [1, 1]} : vector<8x128xf32> to vector<1x128xf32>
    %473 = vector.broadcast %472 : vector<1x128xf32> to vector<8x128xf32>
    %474 = arith.mulf %473, %427 : vector<8x128xf32>
    %475 = arith.subf %419, %474 : vector<8x128xf32>
    %476 = vector.broadcast %472 : vector<1x128xf32> to vector<8x128xf32>
    %477 = arith.mulf %476, %429 : vector<8x128xf32>
    %478 = arith.subf %422, %477 : vector<8x128xf32>
    %479 = vector.extract_strided_slice %475 {offsets = [7, 0], sizes = [1, 128], strides = [1, 1]} : vector<8x128xf32> to vector<1x128xf32>
    %cst_22 = arith.constant 1.000000e+00 : f32
    %480 = vector.broadcast %cst_22 : f32 to vector<1x128xf32>
    %481 = arith.divf %480, %479 : vector<1x128xf32>
    %482 = vector.broadcast %481 : vector<1x128xf32> to vector<8x128xf32>
    %483 = arith.mulf %478, %482 : vector<8x128xf32>
    %484 = vector.extract_strided_slice %433 {offsets = [7, 0], sizes = [1, 128], strides = [1, 1]} : vector<8x128xf32> to vector<1x128xf32>
    %485 = vector.broadcast %484 : vector<1x128xf32> to vector<8x128xf32>
    %486 = arith.mulf %485, %483 : vector<8x128xf32>
    %487 = arith.subf %436, %486 : vector<8x128xf32>
    %488 = vector.extract_strided_slice %440 {offsets = [7, 0], sizes = [1, 128], strides = [1, 1]} : vector<8x128xf32> to vector<1x128xf32>
    %489 = vector.broadcast %488 : vector<1x128xf32> to vector<8x128xf32>
    %490 = arith.mulf %489, %483 : vector<8x128xf32>
    %491 = arith.subf %443, %490 : vector<8x128xf32>
    %492 = vector.extract_strided_slice %447 {offsets = [7, 0], sizes = [1, 128], strides = [1, 1]} : vector<8x128xf32> to vector<1x128xf32>
    %493 = vector.broadcast %492 : vector<1x128xf32> to vector<8x128xf32>
    %494 = arith.mulf %493, %483 : vector<8x128xf32>
    %495 = arith.subf %450, %494 : vector<8x128xf32>
    %496 = vector.extract_strided_slice %454 {offsets = [7, 0], sizes = [1, 128], strides = [1, 1]} : vector<8x128xf32> to vector<1x128xf32>
    %497 = vector.broadcast %496 : vector<1x128xf32> to vector<8x128xf32>
    %498 = arith.mulf %497, %483 : vector<8x128xf32>
    %499 = arith.subf %457, %498 : vector<8x128xf32>
    %500 = vector.extract_strided_slice %461 {offsets = [7, 0], sizes = [1, 128], strides = [1, 1]} : vector<8x128xf32> to vector<1x128xf32>
    %501 = vector.broadcast %500 : vector<1x128xf32> to vector<8x128xf32>
    %502 = arith.mulf %501, %483 : vector<8x128xf32>
    %503 = arith.subf %464, %502 : vector<8x128xf32>
    %504 = vector.extract_strided_slice %468 {offsets = [7, 0], sizes = [1, 128], strides = [1, 1]} : vector<8x128xf32> to vector<1x128xf32>
    %505 = vector.broadcast %504 : vector<1x128xf32> to vector<8x128xf32>
    %506 = arith.mulf %505, %483 : vector<8x128xf32>
    %507 = arith.subf %471, %506 : vector<8x128xf32>
    %508 = vector.extract_strided_slice %427 {offsets = [7, 0], sizes = [1, 128], strides = [1, 1]} : vector<8x128xf32> to vector<1x128xf32>
    %509 = vector.broadcast %508 : vector<1x128xf32> to vector<8x128xf32>
    %510 = arith.mulf %509, %483 : vector<8x128xf32>
    %511 = arith.subf %429, %510 : vector<8x128xf32>
    %c0_23 = arith.constant 0 : index
    %c0_24 = arith.constant 0 : index
    %c0_25 = arith.constant 0 : index
    %512 = vector.load %arg2[%c0_23, %c0_24, %c0_25] : memref<1x8x128xf32, #tpu.memory_space<vmem>>, vector<1x8x128xf32>
    %513 = vector.shape_cast %512 : vector<1x8x128xf32> to vector<8x128xf32>
    %cst_26 = arith.constant 2.000000e+00 : f32
    %514 = vector.broadcast %cst_26 : f32 to vector<8x128xf32>
    %515 = arith.mulf %514, %513 : vector<8x128xf32>
    %cst_27 = arith.constant 1.000000e+00 : f32
    %516 = vector.broadcast %cst_27 : f32 to vector<8x128xf32>
    %517 = arith.subf %515, %516 : vector<8x128xf32>
    %518 = tpu.iota {dimensions = array<i32: 0>} : vector<8x1xi32>
    %519 = vector.extract_strided_slice %487 {offsets = [0, 0], sizes = [1, 128], strides = [1, 1]} : vector<8x128xf32> to vector<1x128xf32>
    %520 = vector.extract_strided_slice %513 {offsets = [0, 0], sizes = [1, 128], strides = [1, 1]} : vector<8x128xf32> to vector<1x128xf32>
    %521 = arith.mulf %520, %519 : vector<1x128xf32>
    %cst_28 = arith.constant 1.000000e+00 : f32
    %522 = vector.broadcast %cst_28 : f32 to vector<1x128xf32>
    %523 = arith.subf %522, %520 : vector<1x128xf32>
    %cst_29 = arith.constant 1.000000e+00 : f32
    %524 = vector.broadcast %cst_29 : f32 to vector<1x128xf32>
    %525 = arith.subf %524, %519 : vector<1x128xf32>
    %526 = arith.mulf %523, %525 : vector<1x128xf32>
    %527 = arith.addf %521, %526 : vector<1x128xf32>
    %c0_i32 = arith.constant 0 : i32
    %528 = vector.broadcast %c0_i32 : i32 to vector<8x1xi32>
    %529 = arith.cmpi eq, %518, %528 : vector<8x1xi32>
    %530 = vector.extract_strided_slice %517 {offsets = [0, 0], sizes = [1, 128], strides = [1, 1]} : vector<8x128xf32> to vector<1x128xf32>
    %531 = vector.broadcast %530 : vector<1x128xf32> to vector<8x128xf32>
    %532 = arith.mulf %487, %531 : vector<8x128xf32>
    %533 = vector.shape_cast %529 : vector<8x1xi1> to vector<8x1xi1>
    %534 = vector.broadcast %533 : vector<8x1xi1> to vector<8x128xi1>
    %535 = vector.shape_cast %527 : vector<1x128xf32> to vector<1x128xf32>
    %536 = vector.broadcast %535 : vector<1x128xf32> to vector<8x128xf32>
    %537 = arith.select %534, %536, %532 : vector<8x128xi1>, vector<8x128xf32>
    %538 = vector.extract_strided_slice %491 {offsets = [1, 0], sizes = [1, 128], strides = [1, 1]} : vector<8x128xf32> to vector<1x128xf32>
    %539 = vector.extract_strided_slice %513 {offsets = [1, 0], sizes = [1, 128], strides = [1, 1]} : vector<8x128xf32> to vector<1x128xf32>
    %540 = arith.mulf %539, %538 : vector<1x128xf32>
    %cst_30 = arith.constant 1.000000e+00 : f32
    %541 = vector.broadcast %cst_30 : f32 to vector<1x128xf32>
    %542 = arith.subf %541, %539 : vector<1x128xf32>
    %cst_31 = arith.constant 1.000000e+00 : f32
    %543 = vector.broadcast %cst_31 : f32 to vector<1x128xf32>
    %544 = arith.subf %543, %538 : vector<1x128xf32>
    %545 = arith.mulf %542, %544 : vector<1x128xf32>
    %546 = arith.addf %540, %545 : vector<1x128xf32>
    %c1_i32 = arith.constant 1 : i32
    %547 = vector.broadcast %c1_i32 : i32 to vector<8x1xi32>
    %548 = arith.cmpi eq, %518, %547 : vector<8x1xi32>
    %549 = vector.extract_strided_slice %517 {offsets = [1, 0], sizes = [1, 128], strides = [1, 1]} : vector<8x128xf32> to vector<1x128xf32>
    %550 = vector.broadcast %549 : vector<1x128xf32> to vector<8x128xf32>
    %551 = arith.mulf %491, %550 : vector<8x128xf32>
    %552 = vector.shape_cast %548 : vector<8x1xi1> to vector<8x1xi1>
    %553 = vector.broadcast %552 : vector<8x1xi1> to vector<8x128xi1>
    %554 = vector.shape_cast %546 : vector<1x128xf32> to vector<1x128xf32>
    %555 = vector.broadcast %554 : vector<1x128xf32> to vector<8x128xf32>
    %556 = arith.select %553, %555, %551 : vector<8x128xi1>, vector<8x128xf32>
    %557 = vector.extract_strided_slice %495 {offsets = [2, 0], sizes = [1, 128], strides = [1, 1]} : vector<8x128xf32> to vector<1x128xf32>
    %558 = vector.extract_strided_slice %513 {offsets = [2, 0], sizes = [1, 128], strides = [1, 1]} : vector<8x128xf32> to vector<1x128xf32>
    %559 = arith.mulf %558, %557 : vector<1x128xf32>
    %cst_32 = arith.constant 1.000000e+00 : f32
    %560 = vector.broadcast %cst_32 : f32 to vector<1x128xf32>
    %561 = arith.subf %560, %558 : vector<1x128xf32>
    %cst_33 = arith.constant 1.000000e+00 : f32
    %562 = vector.broadcast %cst_33 : f32 to vector<1x128xf32>
    %563 = arith.subf %562, %557 : vector<1x128xf32>
    %564 = arith.mulf %561, %563 : vector<1x128xf32>
    %565 = arith.addf %559, %564 : vector<1x128xf32>
    %c2_i32 = arith.constant 2 : i32
    %566 = vector.broadcast %c2_i32 : i32 to vector<8x1xi32>
    %567 = arith.cmpi eq, %518, %566 : vector<8x1xi32>
    %568 = vector.extract_strided_slice %517 {offsets = [2, 0], sizes = [1, 128], strides = [1, 1]} : vector<8x128xf32> to vector<1x128xf32>
    %569 = vector.broadcast %568 : vector<1x128xf32> to vector<8x128xf32>
    %570 = arith.mulf %495, %569 : vector<8x128xf32>
    %571 = vector.shape_cast %567 : vector<8x1xi1> to vector<8x1xi1>
    %572 = vector.broadcast %571 : vector<8x1xi1> to vector<8x128xi1>
    %573 = vector.shape_cast %565 : vector<1x128xf32> to vector<1x128xf32>
    %574 = vector.broadcast %573 : vector<1x128xf32> to vector<8x128xf32>
    %575 = arith.select %572, %574, %570 : vector<8x128xi1>, vector<8x128xf32>
    %576 = vector.extract_strided_slice %499 {offsets = [3, 0], sizes = [1, 128], strides = [1, 1]} : vector<8x128xf32> to vector<1x128xf32>
    %577 = vector.extract_strided_slice %513 {offsets = [3, 0], sizes = [1, 128], strides = [1, 1]} : vector<8x128xf32> to vector<1x128xf32>
    %578 = arith.mulf %577, %576 : vector<1x128xf32>
    %cst_34 = arith.constant 1.000000e+00 : f32
    %579 = vector.broadcast %cst_34 : f32 to vector<1x128xf32>
    %580 = arith.subf %579, %577 : vector<1x128xf32>
    %cst_35 = arith.constant 1.000000e+00 : f32
    %581 = vector.broadcast %cst_35 : f32 to vector<1x128xf32>
    %582 = arith.subf %581, %576 : vector<1x128xf32>
    %583 = arith.mulf %580, %582 : vector<1x128xf32>
    %584 = arith.addf %578, %583 : vector<1x128xf32>
    %c3_i32 = arith.constant 3 : i32
    %585 = vector.broadcast %c3_i32 : i32 to vector<8x1xi32>
    %586 = arith.cmpi eq, %518, %585 : vector<8x1xi32>
    %587 = vector.extract_strided_slice %517 {offsets = [3, 0], sizes = [1, 128], strides = [1, 1]} : vector<8x128xf32> to vector<1x128xf32>
    %588 = vector.broadcast %587 : vector<1x128xf32> to vector<8x128xf32>
    %589 = arith.mulf %499, %588 : vector<8x128xf32>
    %590 = vector.shape_cast %586 : vector<8x1xi1> to vector<8x1xi1>
    %591 = vector.broadcast %590 : vector<8x1xi1> to vector<8x128xi1>
    %592 = vector.shape_cast %584 : vector<1x128xf32> to vector<1x128xf32>
    %593 = vector.broadcast %592 : vector<1x128xf32> to vector<8x128xf32>
    %594 = arith.select %591, %593, %589 : vector<8x128xi1>, vector<8x128xf32>
    %595 = vector.extract_strided_slice %503 {offsets = [4, 0], sizes = [1, 128], strides = [1, 1]} : vector<8x128xf32> to vector<1x128xf32>
    %596 = vector.extract_strided_slice %513 {offsets = [4, 0], sizes = [1, 128], strides = [1, 1]} : vector<8x128xf32> to vector<1x128xf32>
    %597 = arith.mulf %596, %595 : vector<1x128xf32>
    %cst_36 = arith.constant 1.000000e+00 : f32
    %598 = vector.broadcast %cst_36 : f32 to vector<1x128xf32>
    %599 = arith.subf %598, %596 : vector<1x128xf32>
    %cst_37 = arith.constant 1.000000e+00 : f32
    %600 = vector.broadcast %cst_37 : f32 to vector<1x128xf32>
    %601 = arith.subf %600, %595 : vector<1x128xf32>
    %602 = arith.mulf %599, %601 : vector<1x128xf32>
    %603 = arith.addf %597, %602 : vector<1x128xf32>
    %c4_i32 = arith.constant 4 : i32
    %604 = vector.broadcast %c4_i32 : i32 to vector<8x1xi32>
    %605 = arith.cmpi eq, %518, %604 : vector<8x1xi32>
    %606 = vector.extract_strided_slice %517 {offsets = [4, 0], sizes = [1, 128], strides = [1, 1]} : vector<8x128xf32> to vector<1x128xf32>
    %607 = vector.broadcast %606 : vector<1x128xf32> to vector<8x128xf32>
    %608 = arith.mulf %503, %607 : vector<8x128xf32>
    %609 = vector.shape_cast %605 : vector<8x1xi1> to vector<8x1xi1>
    %610 = vector.broadcast %609 : vector<8x1xi1> to vector<8x128xi1>
    %611 = vector.shape_cast %603 : vector<1x128xf32> to vector<1x128xf32>
    %612 = vector.broadcast %611 : vector<1x128xf32> to vector<8x128xf32>
    %613 = arith.select %610, %612, %608 : vector<8x128xi1>, vector<8x128xf32>
    %614 = vector.extract_strided_slice %507 {offsets = [5, 0], sizes = [1, 128], strides = [1, 1]} : vector<8x128xf32> to vector<1x128xf32>
    %615 = vector.extract_strided_slice %513 {offsets = [5, 0], sizes = [1, 128], strides = [1, 1]} : vector<8x128xf32> to vector<1x128xf32>
    %616 = arith.mulf %615, %614 : vector<1x128xf32>
    %cst_38 = arith.constant 1.000000e+00 : f32
    %617 = vector.broadcast %cst_38 : f32 to vector<1x128xf32>
    %618 = arith.subf %617, %615 : vector<1x128xf32>
    %cst_39 = arith.constant 1.000000e+00 : f32
    %619 = vector.broadcast %cst_39 : f32 to vector<1x128xf32>
    %620 = arith.subf %619, %614 : vector<1x128xf32>
    %621 = arith.mulf %618, %620 : vector<1x128xf32>
    %622 = arith.addf %616, %621 : vector<1x128xf32>
    %c5_i32 = arith.constant 5 : i32
    %623 = vector.broadcast %c5_i32 : i32 to vector<8x1xi32>
    %624 = arith.cmpi eq, %518, %623 : vector<8x1xi32>
    %625 = vector.extract_strided_slice %517 {offsets = [5, 0], sizes = [1, 128], strides = [1, 1]} : vector<8x128xf32> to vector<1x128xf32>
    %626 = vector.broadcast %625 : vector<1x128xf32> to vector<8x128xf32>
    %627 = arith.mulf %507, %626 : vector<8x128xf32>
    %628 = vector.shape_cast %624 : vector<8x1xi1> to vector<8x1xi1>
    %629 = vector.broadcast %628 : vector<8x1xi1> to vector<8x128xi1>
    %630 = vector.shape_cast %622 : vector<1x128xf32> to vector<1x128xf32>
    %631 = vector.broadcast %630 : vector<1x128xf32> to vector<8x128xf32>
    %632 = arith.select %629, %631, %627 : vector<8x128xi1>, vector<8x128xf32>
    %633 = vector.extract_strided_slice %511 {offsets = [6, 0], sizes = [1, 128], strides = [1, 1]} : vector<8x128xf32> to vector<1x128xf32>
    %634 = vector.extract_strided_slice %513 {offsets = [6, 0], sizes = [1, 128], strides = [1, 1]} : vector<8x128xf32> to vector<1x128xf32>
    %635 = arith.mulf %634, %633 : vector<1x128xf32>
    %cst_40 = arith.constant 1.000000e+00 : f32
    %636 = vector.broadcast %cst_40 : f32 to vector<1x128xf32>
    %637 = arith.subf %636, %634 : vector<1x128xf32>
    %cst_41 = arith.constant 1.000000e+00 : f32
    %638 = vector.broadcast %cst_41 : f32 to vector<1x128xf32>
    %639 = arith.subf %638, %633 : vector<1x128xf32>
    %640 = arith.mulf %637, %639 : vector<1x128xf32>
    %641 = arith.addf %635, %640 : vector<1x128xf32>
    %c6_i32 = arith.constant 6 : i32
    %642 = vector.broadcast %c6_i32 : i32 to vector<8x1xi32>
    %643 = arith.cmpi eq, %518, %642 : vector<8x1xi32>
    %644 = vector.extract_strided_slice %517 {offsets = [6, 0], sizes = [1, 128], strides = [1, 1]} : vector<8x128xf32> to vector<1x128xf32>
    %645 = vector.broadcast %644 : vector<1x128xf32> to vector<8x128xf32>
    %646 = arith.mulf %511, %645 : vector<8x128xf32>
    %647 = vector.shape_cast %643 : vector<8x1xi1> to vector<8x1xi1>
    %648 = vector.broadcast %647 : vector<8x1xi1> to vector<8x128xi1>
    %649 = vector.shape_cast %641 : vector<1x128xf32> to vector<1x128xf32>
    %650 = vector.broadcast %649 : vector<1x128xf32> to vector<8x128xf32>
    %651 = arith.select %648, %650, %646 : vector<8x128xi1>, vector<8x128xf32>
    %652 = vector.extract_strided_slice %483 {offsets = [7, 0], sizes = [1, 128], strides = [1, 1]} : vector<8x128xf32> to vector<1x128xf32>
    %653 = vector.extract_strided_slice %513 {offsets = [7, 0], sizes = [1, 128], strides = [1, 1]} : vector<8x128xf32> to vector<1x128xf32>
    %654 = arith.mulf %653, %652 : vector<1x128xf32>
    %cst_42 = arith.constant 1.000000e+00 : f32
    %655 = vector.broadcast %cst_42 : f32 to vector<1x128xf32>
    %656 = arith.subf %655, %653 : vector<1x128xf32>
    %cst_43 = arith.constant 1.000000e+00 : f32
    %657 = vector.broadcast %cst_43 : f32 to vector<1x128xf32>
    %658 = arith.subf %657, %652 : vector<1x128xf32>
    %659 = arith.mulf %656, %658 : vector<1x128xf32>
    %660 = arith.addf %654, %659 : vector<1x128xf32>
    %c7_i32 = arith.constant 7 : i32
    %661 = vector.broadcast %c7_i32 : i32 to vector<8x1xi32>
    %662 = arith.cmpi eq, %518, %661 : vector<8x1xi32>
    %663 = vector.extract_strided_slice %517 {offsets = [7, 0], sizes = [1, 128], strides = [1, 1]} : vector<8x128xf32> to vector<1x128xf32>
    %664 = vector.broadcast %663 : vector<1x128xf32> to vector<8x128xf32>
    %665 = arith.mulf %483, %664 : vector<8x128xf32>
    %666 = vector.shape_cast %662 : vector<8x1xi1> to vector<8x1xi1>
    %667 = vector.broadcast %666 : vector<8x1xi1> to vector<8x128xi1>
    %668 = vector.shape_cast %660 : vector<1x128xf32> to vector<1x128xf32>
    %669 = vector.broadcast %668 : vector<1x128xf32> to vector<8x128xf32>
    %670 = arith.select %667, %669, %665 : vector<8x128xi1>, vector<8x128xf32>
    %c0_44 = arith.constant 0 : index
    %c0_45 = arith.constant 0 : index
    %671 = vector.load %arg1[%c0_44, %c0_45] : memref<4x1xf32, #tpu.memory_space<vmem>>, vector<4x1xf32>
    %cst_46 = arith.constant dense<0xFF800000> : vector<1xf32>
    %672 = vector.multi_reduction <maximumf>, %671, %cst_46 [0] : vector<4x1xf32> to vector<1xf32>
    %673 = vector.shape_cast %672 : vector<1xf32> to vector<1x1xf32>
    %674 = vector.broadcast %673 : vector<1x1xf32> to vector<4x1xf32>
    %675 = arith.subf %671, %674 : vector<4x1xf32>
    %676 = math.exp %675 : vector<4x1xf32>
    %cst_47 = arith.constant dense<0.000000e+00> : vector<1xf32>
    %677 = vector.multi_reduction <add>, %676, %cst_47 [0] : vector<4x1xf32> to vector<1xf32>
    %678 = vector.shape_cast %677 : vector<1xf32> to vector<1x1xf32>
    %cst_48 = arith.constant 1.000000e+00 : f32
    %679 = vector.broadcast %cst_48 : f32 to vector<1x1xf32>
    %680 = arith.divf %679, %678 : vector<1x1xf32>
    %681 = vector.broadcast %680 : vector<1x1xf32> to vector<4x1xf32>
    %682 = arith.mulf %676, %681 : vector<4x1xf32>
    %683 = vector.broadcast %682 : vector<4x1xf32> to vector<4x128xf32>
    %684 = arith.mulf %683, %36 : vector<4x128xf32>
    %cst_49 = arith.constant dense<0.000000e+00> : vector<128xf32>
    %685 = vector.multi_reduction <add>, %684, %cst_49 [0] : vector<4x128xf32> to vector<128xf32>
    %686 = vector.shape_cast %685 : vector<128xf32> to vector<1x128xf32>
    %687 = vector.extract_strided_slice %537 {offsets = [0, 0], sizes = [1, 128], strides = [1, 1]} : vector<8x128xf32> to vector<1x128xf32>
    %688 = arith.mulf %686, %687 : vector<1x128xf32>
    %689 = tpu.reciprocal %687 {approx = true} : vector<1x128xf32> -> vector<1x128xf32>
    %690 = vector.extract_strided_slice %556 {offsets = [0, 0], sizes = [1, 128], strides = [1, 1]} : vector<8x128xf32> to vector<1x128xf32>
    %691 = arith.mulf %690, %689 : vector<1x128xf32>
    %692 = vector.broadcast %691 : vector<1x128xf32> to vector<8x128xf32>
    %693 = arith.mulf %692, %537 : vector<8x128xf32>
    %694 = arith.subf %556, %693 : vector<8x128xf32>
    %695 = vector.extract_strided_slice %575 {offsets = [0, 0], sizes = [1, 128], strides = [1, 1]} : vector<8x128xf32> to vector<1x128xf32>
    %696 = arith.mulf %695, %689 : vector<1x128xf32>
    %697 = vector.broadcast %696 : vector<1x128xf32> to vector<8x128xf32>
    %698 = arith.mulf %697, %537 : vector<8x128xf32>
    %699 = arith.subf %575, %698 : vector<8x128xf32>
    %700 = vector.extract_strided_slice %594 {offsets = [0, 0], sizes = [1, 128], strides = [1, 1]} : vector<8x128xf32> to vector<1x128xf32>
    %701 = arith.mulf %700, %689 : vector<1x128xf32>
    %702 = vector.broadcast %701 : vector<1x128xf32> to vector<8x128xf32>
    %703 = arith.mulf %702, %537 : vector<8x128xf32>
    %704 = arith.subf %594, %703 : vector<8x128xf32>
    %705 = vector.extract_strided_slice %613 {offsets = [0, 0], sizes = [1, 128], strides = [1, 1]} : vector<8x128xf32> to vector<1x128xf32>
    %706 = arith.mulf %705, %689 : vector<1x128xf32>
    %707 = vector.broadcast %706 : vector<1x128xf32> to vector<8x128xf32>
    %708 = arith.mulf %707, %537 : vector<8x128xf32>
    %709 = arith.subf %613, %708 : vector<8x128xf32>
    %710 = vector.extract_strided_slice %632 {offsets = [0, 0], sizes = [1, 128], strides = [1, 1]} : vector<8x128xf32> to vector<1x128xf32>
    %711 = arith.mulf %710, %689 : vector<1x128xf32>
    %712 = vector.broadcast %711 : vector<1x128xf32> to vector<8x128xf32>
    %713 = arith.mulf %712, %537 : vector<8x128xf32>
    %714 = arith.subf %632, %713 : vector<8x128xf32>
    %715 = vector.extract_strided_slice %651 {offsets = [0, 0], sizes = [1, 128], strides = [1, 1]} : vector<8x128xf32> to vector<1x128xf32>
    %716 = arith.mulf %715, %689 : vector<1x128xf32>
    %717 = vector.broadcast %716 : vector<1x128xf32> to vector<8x128xf32>
    %718 = arith.mulf %717, %537 : vector<8x128xf32>
    %719 = arith.subf %651, %718 : vector<8x128xf32>
    %720 = vector.extract_strided_slice %670 {offsets = [0, 0], sizes = [1, 128], strides = [1, 1]} : vector<8x128xf32> to vector<1x128xf32>
    %721 = arith.mulf %720, %689 : vector<1x128xf32>
    %722 = vector.broadcast %721 : vector<1x128xf32> to vector<8x128xf32>
    %723 = arith.mulf %722, %537 : vector<8x128xf32>
    %724 = arith.subf %670, %723 : vector<8x128xf32>
    %725 = vector.extract_strided_slice %694 {offsets = [1, 0], sizes = [1, 128], strides = [1, 1]} : vector<8x128xf32> to vector<1x128xf32>
    %726 = arith.mulf %688, %725 : vector<1x128xf32>
    %727 = tpu.reciprocal %725 {approx = true} : vector<1x128xf32> -> vector<1x128xf32>
    %728 = vector.extract_strided_slice %699 {offsets = [1, 0], sizes = [1, 128], strides = [1, 1]} : vector<8x128xf32> to vector<1x128xf32>
    %729 = arith.mulf %728, %727 : vector<1x128xf32>
    %730 = vector.broadcast %729 : vector<1x128xf32> to vector<8x128xf32>
    %731 = arith.mulf %730, %694 : vector<8x128xf32>
    %732 = arith.subf %699, %731 : vector<8x128xf32>
    %733 = vector.extract_strided_slice %704 {offsets = [1, 0], sizes = [1, 128], strides = [1, 1]} : vector<8x128xf32> to vector<1x128xf32>
    %734 = arith.mulf %733, %727 : vector<1x128xf32>
    %735 = vector.broadcast %734 : vector<1x128xf32> to vector<8x128xf32>
    %736 = arith.mulf %735, %694 : vector<8x128xf32>
    %737 = arith.subf %704, %736 : vector<8x128xf32>
    %738 = vector.extract_strided_slice %709 {offsets = [1, 0], sizes = [1, 128], strides = [1, 1]} : vector<8x128xf32> to vector<1x128xf32>
    %739 = arith.mulf %738, %727 : vector<1x128xf32>
    %740 = vector.broadcast %739 : vector<1x128xf32> to vector<8x128xf32>
    %741 = arith.mulf %740, %694 : vector<8x128xf32>
    %742 = arith.subf %709, %741 : vector<8x128xf32>
    %743 = vector.extract_strided_slice %714 {offsets = [1, 0], sizes = [1, 128], strides = [1, 1]} : vector<8x128xf32> to vector<1x128xf32>
    %744 = arith.mulf %743, %727 : vector<1x128xf32>
    %745 = vector.broadcast %744 : vector<1x128xf32> to vector<8x128xf32>
    %746 = arith.mulf %745, %694 : vector<8x128xf32>
    %747 = arith.subf %714, %746 : vector<8x128xf32>
    %748 = vector.extract_strided_slice %719 {offsets = [1, 0], sizes = [1, 128], strides = [1, 1]} : vector<8x128xf32> to vector<1x128xf32>
    %749 = arith.mulf %748, %727 : vector<1x128xf32>
    %750 = vector.broadcast %749 : vector<1x128xf32> to vector<8x128xf32>
    %751 = arith.mulf %750, %694 : vector<8x128xf32>
    %752 = arith.subf %719, %751 : vector<8x128xf32>
    %753 = vector.extract_strided_slice %724 {offsets = [1, 0], sizes = [1, 128], strides = [1, 1]} : vector<8x128xf32> to vector<1x128xf32>
    %754 = arith.mulf %753, %727 : vector<1x128xf32>
    %755 = vector.broadcast %754 : vector<1x128xf32> to vector<8x128xf32>
    %756 = arith.mulf %755, %694 : vector<8x128xf32>
    %757 = arith.subf %724, %756 : vector<8x128xf32>
    %758 = vector.extract_strided_slice %732 {offsets = [2, 0], sizes = [1, 128], strides = [1, 1]} : vector<8x128xf32> to vector<1x128xf32>
    %759 = arith.mulf %726, %758 : vector<1x128xf32>
    %760 = tpu.reciprocal %758 {approx = true} : vector<1x128xf32> -> vector<1x128xf32>
    %761 = vector.extract_strided_slice %737 {offsets = [2, 0], sizes = [1, 128], strides = [1, 1]} : vector<8x128xf32> to vector<1x128xf32>
    %762 = arith.mulf %761, %760 : vector<1x128xf32>
    %763 = vector.broadcast %762 : vector<1x128xf32> to vector<8x128xf32>
    %764 = arith.mulf %763, %732 : vector<8x128xf32>
    %765 = arith.subf %737, %764 : vector<8x128xf32>
    %766 = vector.extract_strided_slice %742 {offsets = [2, 0], sizes = [1, 128], strides = [1, 1]} : vector<8x128xf32> to vector<1x128xf32>
    %767 = arith.mulf %766, %760 : vector<1x128xf32>
    %768 = vector.broadcast %767 : vector<1x128xf32> to vector<8x128xf32>
    %769 = arith.mulf %768, %732 : vector<8x128xf32>
    %770 = arith.subf %742, %769 : vector<8x128xf32>
    %771 = vector.extract_strided_slice %747 {offsets = [2, 0], sizes = [1, 128], strides = [1, 1]} : vector<8x128xf32> to vector<1x128xf32>
    %772 = arith.mulf %771, %760 : vector<1x128xf32>
    %773 = vector.broadcast %772 : vector<1x128xf32> to vector<8x128xf32>
    %774 = arith.mulf %773, %732 : vector<8x128xf32>
    %775 = arith.subf %747, %774 : vector<8x128xf32>
    %776 = vector.extract_strided_slice %752 {offsets = [2, 0], sizes = [1, 128], strides = [1, 1]} : vector<8x128xf32> to vector<1x128xf32>
    %777 = arith.mulf %776, %760 : vector<1x128xf32>
    %778 = vector.broadcast %777 : vector<1x128xf32> to vector<8x128xf32>
    %779 = arith.mulf %778, %732 : vector<8x128xf32>
    %780 = arith.subf %752, %779 : vector<8x128xf32>
    %781 = vector.extract_strided_slice %757 {offsets = [2, 0], sizes = [1, 128], strides = [1, 1]} : vector<8x128xf32> to vector<1x128xf32>
    %782 = arith.mulf %781, %760 : vector<1x128xf32>
    %783 = vector.broadcast %782 : vector<1x128xf32> to vector<8x128xf32>
    %784 = arith.mulf %783, %732 : vector<8x128xf32>
    %785 = arith.subf %757, %784 : vector<8x128xf32>
    %786 = vector.extract_strided_slice %765 {offsets = [3, 0], sizes = [1, 128], strides = [1, 1]} : vector<8x128xf32> to vector<1x128xf32>
    %787 = arith.mulf %759, %786 : vector<1x128xf32>
    %788 = tpu.reciprocal %786 {approx = true} : vector<1x128xf32> -> vector<1x128xf32>
    %789 = vector.extract_strided_slice %770 {offsets = [3, 0], sizes = [1, 128], strides = [1, 1]} : vector<8x128xf32> to vector<1x128xf32>
    %790 = arith.mulf %789, %788 : vector<1x128xf32>
    %791 = vector.broadcast %790 : vector<1x128xf32> to vector<8x128xf32>
    %792 = arith.mulf %791, %765 : vector<8x128xf32>
    %793 = arith.subf %770, %792 : vector<8x128xf32>
    %794 = vector.extract_strided_slice %775 {offsets = [3, 0], sizes = [1, 128], strides = [1, 1]} : vector<8x128xf32> to vector<1x128xf32>
    %795 = arith.mulf %794, %788 : vector<1x128xf32>
    %796 = vector.broadcast %795 : vector<1x128xf32> to vector<8x128xf32>
    %797 = arith.mulf %796, %765 : vector<8x128xf32>
    %798 = arith.subf %775, %797 : vector<8x128xf32>
    %799 = vector.extract_strided_slice %780 {offsets = [3, 0], sizes = [1, 128], strides = [1, 1]} : vector<8x128xf32> to vector<1x128xf32>
    %800 = arith.mulf %799, %788 : vector<1x128xf32>
    %801 = vector.broadcast %800 : vector<1x128xf32> to vector<8x128xf32>
    %802 = arith.mulf %801, %765 : vector<8x128xf32>
    %803 = arith.subf %780, %802 : vector<8x128xf32>
    %804 = vector.extract_strided_slice %785 {offsets = [3, 0], sizes = [1, 128], strides = [1, 1]} : vector<8x128xf32> to vector<1x128xf32>
    %805 = arith.mulf %804, %788 : vector<1x128xf32>
    %806 = vector.broadcast %805 : vector<1x128xf32> to vector<8x128xf32>
    %807 = arith.mulf %806, %765 : vector<8x128xf32>
    %808 = arith.subf %785, %807 : vector<8x128xf32>
    %809 = vector.extract_strided_slice %793 {offsets = [4, 0], sizes = [1, 128], strides = [1, 1]} : vector<8x128xf32> to vector<1x128xf32>
    %810 = arith.mulf %787, %809 : vector<1x128xf32>
    %811 = tpu.reciprocal %809 {approx = true} : vector<1x128xf32> -> vector<1x128xf32>
    %812 = vector.extract_strided_slice %798 {offsets = [4, 0], sizes = [1, 128], strides = [1, 1]} : vector<8x128xf32> to vector<1x128xf32>
    %813 = arith.mulf %812, %811 : vector<1x128xf32>
    %814 = vector.broadcast %813 : vector<1x128xf32> to vector<8x128xf32>
    %815 = arith.mulf %814, %793 : vector<8x128xf32>
    %816 = arith.subf %798, %815 : vector<8x128xf32>
    %817 = vector.extract_strided_slice %803 {offsets = [4, 0], sizes = [1, 128], strides = [1, 1]} : vector<8x128xf32> to vector<1x128xf32>
    %818 = arith.mulf %817, %811 : vector<1x128xf32>
    %819 = vector.broadcast %818 : vector<1x128xf32> to vector<8x128xf32>
    %820 = arith.mulf %819, %793 : vector<8x128xf32>
    %821 = arith.subf %803, %820 : vector<8x128xf32>
    %822 = vector.extract_strided_slice %808 {offsets = [4, 0], sizes = [1, 128], strides = [1, 1]} : vector<8x128xf32> to vector<1x128xf32>
    %823 = arith.mulf %822, %811 : vector<1x128xf32>
    %824 = vector.broadcast %823 : vector<1x128xf32> to vector<8x128xf32>
    %825 = arith.mulf %824, %793 : vector<8x128xf32>
    %826 = arith.subf %808, %825 : vector<8x128xf32>
    %827 = vector.extract_strided_slice %816 {offsets = [5, 0], sizes = [1, 128], strides = [1, 1]} : vector<8x128xf32> to vector<1x128xf32>
    %828 = arith.mulf %810, %827 : vector<1x128xf32>
    %829 = tpu.reciprocal %827 {approx = true} : vector<1x128xf32> -> vector<1x128xf32>
    %830 = vector.extract_strided_slice %821 {offsets = [5, 0], sizes = [1, 128], strides = [1, 1]} : vector<8x128xf32> to vector<1x128xf32>
    %831 = arith.mulf %830, %829 : vector<1x128xf32>
    %832 = vector.broadcast %831 : vector<1x128xf32> to vector<8x128xf32>
    %833 = arith.mulf %832, %816 : vector<8x128xf32>
    %834 = arith.subf %821, %833 : vector<8x128xf32>
    %835 = vector.extract_strided_slice %826 {offsets = [5, 0], sizes = [1, 128], strides = [1, 1]} : vector<8x128xf32> to vector<1x128xf32>
    %836 = arith.mulf %835, %829 : vector<1x128xf32>
    %837 = vector.broadcast %836 : vector<1x128xf32> to vector<8x128xf32>
    %838 = arith.mulf %837, %816 : vector<8x128xf32>
    %839 = arith.subf %826, %838 : vector<8x128xf32>
    %840 = vector.extract_strided_slice %834 {offsets = [6, 0], sizes = [1, 128], strides = [1, 1]} : vector<8x128xf32> to vector<1x128xf32>
    %841 = arith.mulf %828, %840 : vector<1x128xf32>
    %842 = tpu.reciprocal %840 {approx = true} : vector<1x128xf32> -> vector<1x128xf32>
    %843 = vector.extract_strided_slice %839 {offsets = [6, 0], sizes = [1, 128], strides = [1, 1]} : vector<8x128xf32> to vector<1x128xf32>
    %844 = arith.mulf %843, %842 : vector<1x128xf32>
    %845 = vector.broadcast %844 : vector<1x128xf32> to vector<8x128xf32>
    %846 = arith.mulf %845, %834 : vector<8x128xf32>
    %847 = arith.subf %839, %846 : vector<8x128xf32>
    %848 = vector.extract_strided_slice %847 {offsets = [7, 0], sizes = [1, 128], strides = [1, 1]} : vector<8x128xf32> to vector<1x128xf32>
    %849 = arith.mulf %841, %848 : vector<1x128xf32>
    %850 = vector.extract_strided_slice %849 {offsets = [0, 0], sizes = [1, 32], strides = [1, 1]} : vector<1x128xf32> to vector<1x32xf32>
    %851 = vector.extract_strided_slice %849 {offsets = [0, 32], sizes = [1, 32], strides = [1, 1]} : vector<1x128xf32> to vector<1x32xf32>
    %852 = arith.addf %850, %851 : vector<1x32xf32>
    %853 = vector.extract_strided_slice %849 {offsets = [0, 64], sizes = [1, 32], strides = [1, 1]} : vector<1x128xf32> to vector<1x32xf32>
    %854 = arith.addf %852, %853 : vector<1x32xf32>
    %855 = vector.extract_strided_slice %849 {offsets = [0, 96], sizes = [1, 32], strides = [1, 1]} : vector<1x128xf32> to vector<1x32xf32>
    %856 = arith.addf %854, %855 : vector<1x32xf32>
    %857 = math.log %856 : vector<1x32xf32>
    %cst_50 = arith.constant dense<0.000000e+00> : vector<1xf32>
    %858 = vector.multi_reduction <add>, %857, %cst_50 [1] : vector<1x32xf32> to vector<1xf32>
    %859 = vector.shape_cast %858 : vector<1xf32> to vector<1x1xf32>
    %860 = vector.shape_cast %859 : vector<1x1xf32> to vector<1x1x1xf32>
    %c0_51 = arith.constant 0 : index
    %c0_52 = arith.constant 0 : index
    %c0_53 = arith.constant 0 : index
    %861 = vector.load %arg6[%c0_51, %c0_52, %c0_53] : memref<1x1x1xf32, #tpu.memory_space<vmem>>, vector<1x1x1xf32>
    tpu.vector_store %arg6[%c0_51, %c0_52, %c0_53], %860 {strides = array<i32>} : memref<1x1x1xf32, #tpu.memory_space<vmem>>, vector<1x1x1xf32>,
    return
  }
  func.func @transform_0(%arg0: i32) -> (i32, i32) {
    %c0_i32 = arith.constant 0 : i32
    %c0_i32_0 = arith.constant 0 : i32
    %c0_i32_1 = arith.constant 0 : i32
    return %c0_i32, %c0_i32_0 : i32, i32
  }
  func.func @transform_1(%arg0: i32) -> (i32, i32, i32) {
    %c0_i32 = arith.constant 0 : i32
    %c0_i32_0 = arith.constant 0 : i32
    %c0_i32_1 = arith.constant 0 : i32
    return %arg0, %c0_i32, %c0_i32_0 : i32, i32, i32
  }
  func.func @transform_2(%arg0: i32) -> (i32, i32, i32) {
    %c0_i32 = arith.constant 0 : i32
    %c0_i32_0 = arith.constant 0 : i32
    %c0_i32_1 = arith.constant 0 : i32
    %c0_i32_2 = arith.constant 0 : i32
    return %c0_i32, %c0_i32_0, %c0_i32_1 : i32, i32, i32
  }
  func.func @transform_3(%arg0: i32) -> (i32, i32, i32) {
    %c0_i32 = arith.constant 0 : i32
    %c0_i32_0 = arith.constant 0 : i32
    %c0_i32_1 = arith.constant 0 : i32
    %c0_i32_2 = arith.constant 0 : i32
    return %c0_i32, %c0_i32_0, %c0_i32_1 : i32, i32, i32
  }
  func.func @transform_4(%arg0: i32) -> (i32, i32) {
    %c0_i32 = arith.constant 0 : i32
    %c0_i32_0 = arith.constant 0 : i32
    %c0_i32_1 = arith.constant 0 : i32
    return %c0_i32, %c0_i32_0 : i32, i32
  }
  func.func @transform_5(%arg0: i32) -> (i32, i32, i32) {
    %c0_i32 = arith.constant 0 : i32
    %c0_i32_0 = arith.constant 0 : i32
    %c0_i32_1 = arith.constant 0 : i32
    return %arg0, %c0_i32, %c0_i32_0 : i32, i32, i32
  }
}

</mosaic_0001>

<llo_original>
// kernel: tile.9
$region0: #{tile.9}
  %s0 = inlined_call_operand.vmem [shape: f32[2,8,4,32], index: 0, kind: input, shape index: {}]
  %s1 = inlined_call_operand.vmem [shape: f32[2,8,128], index: 1, kind: output, shape index: {}]
  $region1: #{tile.9} parent=0
    #allocation0 [shape = 'u8[65536]{0}', space=vmem, size = 0x10000, scoped, tag = 'scoped mem for input reshape']
    %s3 = ssub.s32 16, 1
    %s4 = scalar_lea.vmem %s0, 60
    %v5 = vld [vmem:[%s4] sm:%s3]
    %s6 = scalar_lea.vmem [#allocation0], 120
    %7 = vst [vmem:[%s6] sm:%s3] %v5
    %s8 = scalar_lea.vmem %s0, 56
    %v9 = vld [vmem:[%s8] sm:%s3]
    %s10 = scalar_lea.vmem [#allocation0], 112
    %11 = vst [vmem:[%s10] sm:%s3] %v9
    %s12 = scalar_lea.vmem %s0, 52
    %v13 = vld [vmem:[%s12] sm:%s3]
    %s14 = scalar_lea.vmem [#allocation0], 104
    %15 = vst [vmem:[%s14] sm:%s3] %v13
    %s16 = scalar_lea.vmem %s0, 48
    %v17 = vld [vmem:[%s16] sm:%s3]
    %s18 = scalar_lea.vmem [#allocation0], 96
    %19 = vst [vmem:[%s18] sm:%s3] %v17
    %s20 = scalar_lea.vmem %s0, 44
    %v21 = vld [vmem:[%s20] sm:%s3]
    %s22 = scalar_lea.vmem [#allocation0], 88
    %23 = vst [vmem:[%s22] sm:%s3] %v21
    %s24 = scalar_lea.vmem %s0, 40
    %v25 = vld [vmem:[%s24] sm:%s3]
    %s26 = scalar_lea.vmem [#allocation0], 80
    %27 = vst [vmem:[%s26] sm:%s3] %v25
    %s28 = scalar_lea.vmem %s0, 36
    %v29 = vld [vmem:[%s28] sm:%s3]
    %s30 = scalar_lea.vmem [#allocation0], 72
    %31 = vst [vmem:[%s30] sm:%s3] %v29
    %s32 = scalar_lea.vmem %s0, 32
    %v33 = vld [vmem:[%s32] sm:%s3]
    %s34 = scalar_lea.vmem [#allocation0], 64
    %35 = vst [vmem:[%s34] sm:%s3] %v33
    %s36 = scalar_lea.vmem %s0, 28
    %v37 = vld [vmem:[%s36] sm:%s3]
    %s38 = scalar_lea.vmem [#allocation0], 56
    %39 = vst [vmem:[%s38] sm:%s3] %v37
    %s40 = scalar_lea.vmem %s0, 24
    %v41 = vld [vmem:[%s40] sm:%s3]
    %s42 = scalar_lea.vmem [#allocation0], 48
    %43 = vst [vmem:[%s42] sm:%s3] %v41
    %s44 = scalar_lea.vmem %s0, 20
    %v45 = vld [vmem:[%s44] sm:%s3]
    %s46 = scalar_lea.vmem [#allocation0], 40
    %47 = vst [vmem:[%s46] sm:%s3] %v45
    %s48 = scalar_lea.vmem %s0, 16
    %v49 = vld [vmem:[%s48] sm:%s3]
    %s50 = scalar_lea.vmem [#allocation0], 32
    %51 = vst [vmem:[%s50] sm:%s3] %v49
    %s52 = scalar_lea.vmem %s0, 12
    %v53 = vld [vmem:[%s52] sm:%s3]
    %s54 = scalar_lea.vmem [#allocation0], 24
    %55 = vst [vmem:[%s54] sm:%s3] %v53
    %s56 = scalar_lea.vmem %s0, 8
    %v57 = vld [vmem:[%s56] sm:%s3]
    %s58 = scalar_lea.vmem [#allocation0], 16
    %59 = vst [vmem:[%s58] sm:%s3] %v57
    %s60 = scalar_lea.vmem %s0, 4
    %v61 = vld [vmem:[%s60] sm:%s3]
    %s62 = scalar_lea.vmem [#allocation0], 8
    %63 = vst [vmem:[%s62] sm:%s3] %v61
    %v64 = vld [vmem:[%s0] sm:%s3]
    %65 = vst [vmem:[#allocation0] sm:%s3] %v64
    %v66 = vld [vmem:[#allocation0] ss:$8 sm:$0xf]
    %v67 = vld [vmem:[#allocation0] ss:$8 sm:$0xf0]
    %vm68 = vcmask 1047556
    %v69 = vsel %vm68, %v67, %v66
    %vm70 = vcmask 261120
    %71 = vst.msk [vmem:[%s1] sm:$0xff] %vm70, %v69
    %s72 = scalar_lea.vmem [#allocation0], 64
    %v73 = vld [vmem:[%s72] ss:$8 sm:$0xf]
    %s74 = scalar_lea.vmem [#allocation0], 64
    %v75 = vld [vmem:[%s74] ss:$8 sm:$0xf0]
    %vm76 = vcmask 1047556
    %v77 = vsel %vm76, %v75, %v73
    %vm78 = vcmask 261120
    %s79 = scalar_lea.vmem %s1, 8
    %80 = vst.msk [vmem:[%s79] sm:$0xff] %vm78, %v77
    %s81 = scalar_lea.vmem [#allocation0], 3
    %v82 = vld [vmem:[%s81] ss:$8 sm:$0xf]
    %s83 = scalar_lea.vmem [#allocation0], 3
    %v84 = vld [vmem:[%s83] ss:$8 sm:$0xf0]
    %vm85 = vcmask 1047556
    %v86 = vsel %vm85, %v84, %v82
    %87 = vrot.lane.b32.xlu0 %v86, 96
    %v88 = vpop.permute.xlu0 %87
    %vm89 = vcmask 1048320
    %90 = vst.msk [vmem:[%s1] sm:$0xff] %vm89, %v88
    %s91 = scalar_lea.vmem [#allocation0], 67
    %v92 = vld [vmem:[%s91] ss:$8 sm:$0xf]
    %s93 = scalar_lea.vmem [#allocation0], 67
    %v94 = vld [vmem:[%s93] ss:$8 sm:$0xf0]
    %vm95 = vcmask 1047556
    %v96 = vsel %vm95, %v94, %v92
    %97 = vrot.lane.b32.xlu0 %v96, 96
    %v98 = vpop.permute.xlu0 %97
    %vm99 = vcmask 1048320
    %s100 = scalar_lea.vmem %s1, 8
    %101 = vst.msk [vmem:[%s100] sm:$0xff] %vm99, %v98
    %s102 = scalar_lea.vmem [#allocation0], 2
    %v103 = vld [vmem:[%s102] ss:$8 sm:$0xf]
    %s104 = scalar_lea.vmem [#allocation0], 2
    %v105 = vld [vmem:[%s104] ss:$8 sm:$0xf0]
    %vm106 = vcmask 1047556
    %v107 = vsel %vm106, %v105, %v103
    %108 = vrot.lane.b32.xlu0 %v107, 64
    %v109 = vpop.permute.xlu0 %108
    %vm110 = vcmask 785920
    %111 = vst.msk [vmem:[%s1] sm:$0xff] %vm110, %v109
    %s112 = scalar_lea.vmem [#allocation0], 66
    %v113 = vld [vmem:[%s112] ss:$8 sm:$0xf]
    %s114 = scalar_lea.vmem [#allocation0], 66
    %v115 = vld [vmem:[%s114] ss:$8 sm:$0xf0]
    %vm116 = vcmask 1047556
    %v117 = vsel %vm116, %v115, %v113
    %118 = vrot.lane.b32.xlu0 %v117, 64
    %v119 = vpop.permute.xlu0 %118
    %vm120 = vcmask 785920
    %s121 = scalar_lea.vmem %s1, 8
    %122 = vst.msk [vmem:[%s121] sm:$0xff] %vm120, %v119
    %s123 = scalar_lea.vmem [#allocation0], 1
    %v124 = vld [vmem:[%s123] ss:$8 sm:$0xf]
    %s125 = scalar_lea.vmem [#allocation0], 1
    %v126 = vld [vmem:[%s125] ss:$8 sm:$0xf0]
    %vm127 = vcmask 1047556
    %v128 = vsel %vm127, %v126, %v124
    %129 = vrot.lane.b32.xlu0 %v128, 32
    %v130 = vpop.permute.xlu0 %129
    %vm131 = vcmask 523520
    %132 = vst.msk [vmem:[%s1] sm:$0xff] %vm131, %v130
    %s133 = scalar_lea.vmem [#allocation0], 65
    %v134 = vld [vmem:[%s133] ss:$8 sm:$0xf]
    %s135 = scalar_lea.vmem [#allocation0], 65
    %v136 = vld [vmem:[%s135] ss:$8 sm:$0xf0]
    %vm137 = vcmask 1047556
    %v138 = vsel %vm137, %v136, %v134
    %139 = vrot.lane.b32.xlu0 %v138, 32
    %v140 = vpop.permute.xlu0 %139
    %vm141 = vcmask 523520
    %s142 = scalar_lea.vmem %s1, 8
    %143 = vst.msk [vmem:[%s142] sm:$0xff] %vm141, %v140

// kernel: mograssmann_forward.1
$region0: #{mograssmann_forward.1}
  #allocation0 [shape = 'u32[]', space=smem, size = 0x4, offset = 0x4, fixed_abs, tag = 'smem constant byte address 0x4 - core index']
  #allocation1 [shape = 'u32[72,128]{1,0:T(1,128)}', space=vmem, size = 0x9000, scoped, tag = 'internal scratch']
  %s0 = inlined_call_operand.vmem [shape: f32[4,1], index: 0, kind: input, shape index: {}]
  %s1 = inlined_call_operand.vmem [shape: f32[2,8,128], index: 1, kind: input, shape index: {}]
  %s2 = inlined_call_operand.vmem [shape: f32[8,8,4], index: 2, kind: input, shape index: {}]
  %s3 = inlined_call_operand.vmem [shape: f32[8,8,4], index: 3, kind: input, shape index: {}]
  %s4 = inlined_call_operand.vmem [shape: f32[4,128], index: 4, kind: input, shape index: {}]
  %s5 = inlined_call_operand.vmem [shape: f32[2,1,1], index: 5, kind: output, shape index: {}]
  %s6 = sld [smem:[#allocation0]]
  $region53: #{mograssmann_forward.1} parent=0
    _
  %s8 = ssub.s32 1, %s6
  %s9 = scalar_select 0, %s8, %s6
  loop: start=0, step=1, limit=4
  $region2: #{mograssmann_forward.1} parent=0 // loop_pre_header
    _
  $region3: #{mograssmann_forward.1} parent=0 // loop_header
    %s11 = sphi 0, %s15
    %p12 = scmp.ge.s32.totalorder %s11, 4
    %s19 = sphi 0, %s19
    %s21 = sphi 0, %s19
    %s22 = sphi 0, %s21
    %s36 = sphi 0, %s22
    %s42 = sphi 0, %s44
    %s45 = sphi 0, %s42
    %s46 = sphi 0, %s45
    %s62 = sphi 0, %s46
    %s66 = sphi 0, %s66
    %s68 = sphi 0, %s66
    %s69 = sphi 0, %s68
    %s83 = sphi 0, %s69
    %s87 = sphi 0, %s87
    %s89 = sphi 0, %s87
    %s90 = sphi 0, %s89
    %s104 = sphi 0, %s90
    %s108 = sphi 0, %s108
    %s110 = sphi 0, %s108
    %s111 = sphi 0, %s110
    %s125 = sphi 0, %s111
    %s131 = sphi 0, %s133
    %s134 = sphi 0, %s131
    %s135 = sphi 0, %s134
    %s151 = sphi 0, %s135
  $region4: #{mograssmann_forward.1} parent=0 // loop_header_branch
    %14 = sbr.rel (%p12) target = $region8
  $region5: #{mograssmann_forward.1} parent=0 // loop_body
    %s16 = ssub.s32 %s11, 1
    %s17 = ssub.s32 %s11, 2
    %s18 = sadd.s32 %s11, 1
    %s20 = sadd.s32 %s19, 1
    %p23 = scmp.eq.s32.totalorder %s11, 1
    %p24 = scmp.ne.s32.totalorder %s19, %s21
    %p25 = scmp.eq.s32.totalorder %s11, 0
    %p26 = por %p24, %p25
    %p27 = scmp.ne.s32.totalorder %s19, %s21
    %p28 = scmp.eq.s32.totalorder %s16, 1
    %p29 = por %p27, %p28
    %p30 = scmp.ne.s32.totalorder %s21, %s22
    %p31 = scmp.eq.s32.totalorder %s16, 0
    %p32 = por %p30, %p31
    %p33 = scmp.ne.s32.totalorder %s21, %s22
    %p34 = scmp.eq.s32.totalorder %s17, 1
    %p35 = por %p33, %p34
    %p37 = scmp.ne.s32.totalorder %s22, %s36
    %p38 = scmp.eq.s32.totalorder %s17, 0
    %p39 = por %p37, %p38
    %s40 = ssub.s32 %s11, %s18
    %p41 = scmp.eq.s32.totalorder %s40, 0
    %s43 = sadd.s32 %s42, 1
    %s44 = scalar_select %p41, %s42, %s43
    %p47 = pneg %p41
    %p48 = scmp.eq.s32.totalorder %s11, 1
    %p49 = por %p47, %p48
    %p50 = scmp.ne.s32.totalorder %s42, %s45
    %p51 = scmp.eq.s32.totalorder %s11, 0
    %p52 = por %p50, %p51
    %p53 = scmp.ne.s32.totalorder %s42, %s45
    %p54 = scmp.eq.s32.totalorder %s16, 1
    %p55 = por %p53, %p54
    %p56 = scmp.ne.s32.totalorder %s45, %s46
    %p57 = scmp.eq.s32.totalorder %s16, 0
    %p58 = por %p56, %p57
    %p59 = scmp.ne.s32.totalorder %s45, %s46
    %p60 = scmp.eq.s32.totalorder %s17, 1
    %p61 = por %p59, %p60
    %p63 = scmp.ne.s32.totalorder %s46, %s62
    %p64 = scmp.eq.s32.totalorder %s17, 0
    %p65 = por %p63, %p64
    %s67 = sadd.s32 %s66, 1
    %p70 = scmp.eq.s32.totalorder %s11, 1
    %p71 = scmp.ne.s32.totalorder %s66, %s68
    %p72 = scmp.eq.s32.totalorder %s11, 0
    %p73 = por %p71, %p72
    %p74 = scmp.ne.s32.totalorder %s66, %s68
    %p75 = scmp.eq.s32.totalorder %s16, 1
    %p76 = por %p74, %p75
    %p77 = scmp.ne.s32.totalorder %s68, %s69
    %p78 = scmp.eq.s32.totalorder %s16, 0
    %p79 = por %p77, %p78
    %p80 = scmp.ne.s32.totalorder %s68, %s69
    %p81 = scmp.eq.s32.totalorder %s17, 1
    %p82 = por %p80, %p81
    %p84 = scmp.ne.s32.totalorder %s69, %s83
    %p85 = scmp.eq.s32.totalorder %s17, 0
    %p86 = por %p84, %p85
    %s88 = sadd.s32 %s87, 1
    %p91 = scmp.eq.s32.totalorder %s11, 1
    %p92 = scmp.ne.s32.totalorder %s87, %s89
    %p93 = scmp.eq.s32.totalorder %s11, 0
    %p94 = por %p92, %p93
    %p95 = scmp.ne.s32.totalorder %s87, %s89
    %p96 = scmp.eq.s32.totalorder %s16, 1
    %p97 = por %p95, %p96
    %p98 = scmp.ne.s32.totalorder %s89, %s90
    %p99 = scmp.eq.s32.totalorder %s16, 0
    %p100 = por %p98, %p99
    %p101 = scmp.ne.s32.totalorder %s89, %s90
    %p102 = scmp.eq.s32.totalorder %s17, 1
    %p103 = por %p101, %p102
    %p105 = scmp.ne.s32.totalorder %s90, %s104
    %p106 = scmp.eq.s32.totalorder %s17, 0
    %p107 = por %p105, %p106
    %s109 = sadd.s32 %s108, 1
    %p112 = scmp.eq.s32.totalorder %s11, 1
    %p113 = scmp.ne.s32.totalorder %s108, %s110
    %p114 = scmp.eq.s32.totalorder %s11, 0
    %p115 = por %p113, %p114
    %p116 = scmp.ne.s32.totalorder %s108, %s110
    %p117 = scmp.eq.s32.totalorder %s16, 1
    %p118 = por %p116, %p117
    %p119 = scmp.ne.s32.totalorder %s110, %s111
    %p120 = scmp.eq.s32.totalorder %s16, 0
    %p121 = por %p119, %p120
    %p122 = scmp.ne.s32.totalorder %s110, %s111
    %p123 = scmp.eq.s32.totalorder %s17, 1
    %p124 = por %p122, %p123
    %p126 = scmp.ne.s32.totalorder %s111, %s125
    %p127 = scmp.eq.s32.totalorder %s17, 0
    %p128 = por %p126, %p127
    %s129 = ssub.s32 %s11, %s18
    %p130 = scmp.eq.s32.totalorder %s129, 0
    %s132 = sadd.s32 %s131, 1
    %s133 = scalar_select %p130, %s131, %s132
    %p136 = pneg %p130
    %p137 = scmp.eq.s32.totalorder %s11, 1
    %p138 = por %p136, %p137
    %p139 = scmp.ne.s32.totalorder %s131, %s134
    %p140 = scmp.eq.s32.totalorder %s11, 0
    %p141 = por %p139, %p140
    %p142 = scmp.ne.s32.totalorder %s131, %s134
    %p143 = scmp.eq.s32.totalorder %s16, 1
    %p144 = por %p142, %p143
    %p145 = scmp.ne.s32.totalorder %s134, %s135
    %p146 = scmp.eq.s32.totalorder %s16, 0
    %p147 = por %p145, %p146
    %p148 = scmp.ne.s32.totalorder %s134, %s135
    %p149 = scmp.eq.s32.totalorder %s17, 1
    %p150 = por %p148, %p149
    %p152 = scmp.ne.s32.totalorder %s135, %s151
    %p153 = scmp.eq.s32.totalorder %s17, 0
    %p154 = por %p152, %p153
    %p155 = scmp.le.s32.totalorder 1, %s11
    %p156 = scmp.lt.s32.totalorder %s11, 3
    %p157 = pnand %p155, %p156
    %p158 = pneg %p157
    // Predicated region
    $region9: #{mograssmann_forward.1} parent=5 // pred_check
      _
    $region10: #{mograssmann_forward.1} parent=5 // pred_check_branch
      %160 = sbr.rel (%p157) target = $region12
    $region11: #{mograssmann_forward.1} parent=5 // pred_region
      %s161 = ssub.s32 %s11, 1
      // Predicated region
      $region13: #{mograssmann_forward.1} parent=11 // pred_check
        %p162 = pneg %p32
      $region14: #{mograssmann_forward.1} parent=11 // pred_check_branch
        %164 = sbr.rel (%p162) target = $region16
      $region15: #{mograssmann_forward.1} parent=11 // pred_region
        _
      $region16: #{mograssmann_forward.1} parent=11 // pred_fallthru
        _
      // Predicated region
      $region17: #{mograssmann_forward.1} parent=11 // pred_check
        %p165 = pneg %p79
      $region18: #{mograssmann_forward.1} parent=11 // pred_check_branch
        %167 = sbr.rel (%p165) target = $region20
      $region19: #{mograssmann_forward.1} parent=11 // pred_region
        _
      $region20: #{mograssmann_forward.1} parent=11 // pred_fallthru
        _
      // Predicated region
      $region21: #{mograssmann_forward.1} parent=11 // pred_check
        %p168 = pneg %p100
      $region22: #{mograssmann_forward.1} parent=11 // pred_check_branch
        %170 = sbr.rel (%p168) target = $region24
      $region23: #{mograssmann_forward.1} parent=11 // pred_region
        _
      $region24: #{mograssmann_forward.1} parent=11 // pred_fallthru
        _
      // Predicated region
      $region25: #{mograssmann_forward.1} parent=11 // pred_check
        %p171 = pneg %p121
      $region26: #{mograssmann_forward.1} parent=11 // pred_check_branch
        %173 = sbr.rel (%p171) target = $region28
      $region27: #{mograssmann_forward.1} parent=11 // pred_region
        _
      $region28: #{mograssmann_forward.1} parent=11 // pred_fallthru
        _
    $region12: #{mograssmann_forward.1} parent=5 // pred_fallthru
      _
    %p174 = scmp.lt.s32.totalorder %s11, 2
    // Predicated region
    $region29: #{mograssmann_forward.1} parent=5 // pred_check
      %p175 = pneg %p174
    $region30: #{mograssmann_forward.1} parent=5 // pred_check_branch
      %177 = sbr.rel (%p175) target = $region32
    $region31: #{mograssmann_forward.1} parent=5 // pred_region
      // Predicated region
      $region33: #{mograssmann_forward.1} parent=31 // pred_check
        %p178 = pneg %p52
      $region34: #{mograssmann_forward.1} parent=31 // pred_check_branch
        %180 = sbr.rel (%p178) target = $region36
      $region35: #{mograssmann_forward.1} parent=31 // pred_region
        %p181 = scmp.lt.s32.totalorder %s11, 1
        %s182 = scalar_select %p181, %s11, 1
        %s183 = smul.addr %s182, 8
        %s184 = scalar_lea.vmem %s1, %s183
      $region36: #{mograssmann_forward.1} parent=31 // pred_fallthru
        _
    $region32: #{mograssmann_forward.1} parent=5 // pred_fallthru
      _
    %p185 = scmp.le.s32.totalorder 1, %s11
    %p186 = scmp.lt.s32.totalorder %s11, 3
    %p187 = pnand %p185, %p186
    %p188 = pneg %p187
    // Predicated region
    $region37: #{mograssmann_forward.1} parent=5 // pred_check
      _
    $region38: #{mograssmann_forward.1} parent=5 // pred_check_branch
      %190 = sbr.rel (%p187) target = $region40
    $region39: #{mograssmann_forward.1} parent=5 // pred_region
      %s191 = ssub.s32 %s11, 1
      %p192 = pneg %p32
      %p193 = pneg %p29
      %p194 = scmp.lt.s32.totalorder %s16, 1
      %s195 = scalar_select %p194, %s16, 1
      %s196 = smul.addr %s195, 8
      %s197 = scalar_lea.vmem %s1, %s196
      %p198 = pneg %p58
      %p199 = pneg %p55
      %p200 = pneg %p79
      %p201 = pneg %p76
      %p202 = pneg %p100
      %p203 = pneg %p97
      %p204 = pneg %p121
      %p205 = pneg %p118
      %p206 = pneg %p147
      %p207 = pneg %p144
      %p208 = scmp.lt.s32.totalorder %s16, 1
      %s209 = scalar_select %p208, %s16, 1
      %s210 = scalar_lea.vmem %s5, %s209
      %p211 = scmp.lt.s32.totalorder %s16, 1
      %s212 = scalar_select %p211, %s16, 1
      %s213 = smul.addr %s212, 8
      %s214 = scalar_lea.vmem %s1, %s213
      %p215 = scmp.lt.s32.totalorder %s16, 1
      %s216 = scalar_select %p215, %s16, 1
      %s217 = scalar_lea.vmem %s5, %s216
      %v218 = vlaneseq
      %v219 = vshrl.u32 %v218, 7
      %vm220 = vcmp.eq.s32.totalorder %v219, 0
      %vm221 = vcmp.eq.s32.totalorder %v219, 1
      %vm222 = vcmp.eq.s32.totalorder %v219, 2
      %vm223 = vcmp.eq.s32.totalorder %v219, 3
      %vm224 = vcmp.eq.s32.totalorder %v219, 4
      %vm225 = vcmp.eq.s32.totalorder %v219, 5
      %vm226 = vcmp.eq.s32.totalorder %v219, 6
      %vm227 = vcmp.eq.s32.totalorder %v219, 7
      %v228 = vsel %vm220, 1, 0
      %v229 = vsel %vm221, 1, 0
      %v230 = vsel %vm222, 1, 0
      %v231 = vsel %vm223, 1, 0
      %v232 = vsel %vm224, 1, 0
      %v233 = vsel %vm225, 1, 0
      %v234 = vsel %vm226, 1, 0
      %v235 = vsel %vm227, 1, 0
      %v236 = vcvt.s32.f32 %v228
      %v237 = vcvt.s32.f32 %v229
      %v238 = vcvt.s32.f32 %v230
      %v239 = vcvt.s32.f32 %v231
      %v240 = vcvt.s32.f32 %v232
      %v241 = vcvt.s32.f32 %v233
      %v242 = vcvt.s32.f32 %v234
      %v243 = vcvt.s32.f32 %v235
      %v244 = vld [vmem:[%s2] sm:$0xff]
      %v245 = vld [vmem:[%s2 + $0x8] sm:$0xff]
      %v246 = vld [vmem:[%s2 + $0x10] sm:$0xff]
      %v247 = vld [vmem:[%s2 + $0x18] sm:$0xff]
      %v248 = vld [vmem:[%s2 + $0x20] sm:$0xff]
      %v249 = vld [vmem:[%s2 + $0x28] sm:$0xff]
      %v250 = vld [vmem:[%s2 + $0x30] sm:$0xff]
      %v251 = vld [vmem:[%s2 + $0x38] sm:$0xff]
      %v252 = vmul.f32 %v244, %v236
      %v253 = vmul.f32 %v245, %v237
      %v254 = vmul.f32 %v246, %v238
      %v255 = vmul.f32 %v247, %v239
      %v256 = vmul.f32 %v248, %v240
      %v257 = vmul.f32 %v249, %v241
      %v258 = vmul.f32 %v250, %v242
      %v259 = vmul.f32 %v251, %v243
      %vm260 = vcmask 31744
      %v261 = vsel %vm260, %v252, 0.0
      %v262 = vsel %vm260, %v253, 0.0
      %v263 = vadd.f32 %v261, %v262
      %v264 = vsel %vm260, %v254, 0.0
      %v265 = vadd.f32 %v263, %v264
      %v266 = vsel %vm260, %v255, 0.0
      %v267 = vadd.f32 %v265, %v266
      %v268 = vsel %vm260, %v256, 0.0
      %v269 = vadd.f32 %v267, %v268
      %v270 = vsel %vm260, %v257, 0.0
      %v271 = vadd.f32 %v269, %v270
      %v272 = vsel %vm260, %v258, 0.0
      %v273 = vadd.f32 %v271, %v272
      %v274 = vsel %vm260, %v259, 0.0
      %v275 = vadd.f32 %v273, %v274
      %v276 = vsub.f32 1.0, %v236
      %v277 = vsub.f32 1.0, %v237
      %v278 = vsub.f32 1.0, %v238
      %v279 = vsub.f32 1.0, %v239
      %v280 = vsub.f32 1.0, %v240
      %v281 = vsub.f32 1.0, %v241
      %v282 = vsub.f32 1.0, %v242
      %v283 = vsub.f32 1.0, %v243
      %v284 = vmul.f32 %v244, %v276
      %v285 = vmul.f32 %v245, %v277
      %v286 = vmul.f32 %v246, %v278
      %v287 = vmul.f32 %v247, %v279
      %v288 = vmul.f32 %v248, %v280
      %v289 = vmul.f32 %v249, %v281
      %v290 = vmul.f32 %v250, %v282
      %v291 = vmul.f32 %v251, %v283
      %v292 = vmax.f32 %v275, 0.0
      %v293 = vand.u32 2147483647, %v284
      %v294 = vand.u32 2147483647, %v285
      %v295 = vand.u32 2147483647, %v286
      %v296 = vand.u32 2147483647, %v287
      %v297 = vand.u32 2147483647, %v288
      %v298 = vand.u32 2147483647, %v289
      %v299 = vand.u32 2147483647, %v290
      %v300 = vand.u32 2147483647, %v291
      %v301 = vsel %vm260, %v293, 0.0
      %v302 = vsel %vm260, %v294, 0.0
      %v303 = vadd.f32 %v301, %v302
      %v304 = vsel %vm260, %v295, 0.0
      %v305 = vadd.f32 %v303, %v304
      %v306 = vsel %vm260, %v296, 0.0
      %v307 = vadd.f32 %v305, %v306
      %v308 = vsel %vm260, %v297, 0.0
      %v309 = vadd.f32 %v307, %v308
      %v310 = vsel %vm260, %v298, 0.0
      %v311 = vadd.f32 %v309, %v310
      %v312 = vsel %vm260, %v299, 0.0
      %v313 = vadd.f32 %v311, %v312
      %v314 = vsel %vm260, %v300, 0.0
      %v315 = vadd.f32 %v313, %v314
      %v316 = vadd.f32 %v292, %v315
      %v317 = vmul.f32 %v236, %v316
      %v318 = vmul.f32 %v237, %v316
      %v319 = vmul.f32 %v238, %v316
      %v320 = vmul.f32 %v239, %v316
      %v321 = vmul.f32 %v240, %v316
      %v322 = vmul.f32 %v241, %v316
      %v323 = vmul.f32 %v242, %v316
      %v324 = vmul.f32 %v243, %v316
      %v325 = vadd.f32 %v284, %v317
      %v326 = vadd.f32 %v285, %v318
      %v327 = vadd.f32 %v286, %v319
      %v328 = vadd.f32 %v287, %v320
      %v329 = vadd.f32 %v288, %v321
      %v330 = vadd.f32 %v289, %v322
      %v331 = vadd.f32 %v290, %v323
      %v332 = vadd.f32 %v291, %v324
      %v333 = vld [vmem:[%s3] sm:$0xff]
      %v334 = vld [vmem:[%s3 + $0x8] sm:$0xff]
      %v335 = vld [vmem:[%s3 + $0x10] sm:$0xff]
      %v336 = vld [vmem:[%s3 + $0x18] sm:$0xff]
      %v337 = vld [vmem:[%s3 + $0x20] sm:$0xff]
      %v338 = vld [vmem:[%s3 + $0x28] sm:$0xff]
      %v339 = vld [vmem:[%s3 + $0x30] sm:$0xff]
      %v340 = vld [vmem:[%s3 + $0x38] sm:$0xff]
      %v341 = vmul.f32 %v333, %v236
      %v342 = vmul.f32 %v334, %v237
      %v343 = vmul.f32 %v335, %v238
      %v344 = vmul.f32 %v336, %v239
      %v345 = vmul.f32 %v337, %v240
      %v346 = vmul.f32 %v338, %v241
      %v347 = vmul.f32 %v339, %v242
      %v348 = vmul.f32 %v340, %v243
      %v349 = vsel %vm260, %v341, 0.0
      %v350 = vsel %vm260, %v342, 0.0
      %v351 = vadd.f32 %v349, %v350
      %v352 = vsel %vm260, %v343, 0.0
      %v353 = vadd.f32 %v351, %v352
      %v354 = vsel %vm260, %v344, 0.0
      %v355 = vadd.f32 %v353, %v354
      %v356 = vsel %vm260, %v345, 0.0
      %v357 = vadd.f32 %v355, %v356
      %v358 = vsel %vm260, %v346, 0.0
      %v359 = vadd.f32 %v357, %v358
      %v360 = vsel %vm260, %v347, 0.0
      %v361 = vadd.f32 %v359, %v360
      %v362 = vsel %vm260, %v348, 0.0
      %v363 = vadd.f32 %v361, %v362
      %v364 = vmul.f32 %v333, %v276
      %v365 = vmul.f32 %v334, %v277
      %v366 = vmul.f32 %v335, %v278
      %v367 = vmul.f32 %v336, %v279
      %v368 = vmul.f32 %v337, %v280
      %v369 = vmul.f32 %v338, %v281
      %v370 = vmul.f32 %v339, %v282
      %v371 = vmul.f32 %v340, %v283
      %v372 = vmax.f32 %v363, 0.0
      %v373 = vand.u32 2147483647, %v364
      %v374 = vand.u32 2147483647, %v365
      %v375 = vand.u32 2147483647, %v366
      %v376 = vand.u32 2147483647, %v367
      %v377 = vand.u32 2147483647, %v368
      %v378 = vand.u32 2147483647, %v369
      %v379 = vand.u32 2147483647, %v370
      %v380 = vand.u32 2147483647, %v371
      %v381 = vsel %vm260, %v373, 0.0
      %v382 = vsel %vm260, %v374, 0.0
      %v383 = vadd.f32 %v381, %v382
      %v384 = vsel %vm260, %v375, 0.0
      %v385 = vadd.f32 %v383, %v384
      %v386 = vsel %vm260, %v376, 0.0
      %v387 = vadd.f32 %v385, %v386
      %v388 = vsel %vm260, %v377, 0.0
      %v389 = vadd.f32 %v387, %v388
      %v390 = vsel %vm260, %v378, 0.0
      %v391 = vadd.f32 %v389, %v390
      %v392 = vsel %vm260, %v379, 0.0
      %v393 = vadd.f32 %v391, %v392
      %v394 = vsel %vm260, %v380, 0.0
      %v395 = vadd.f32 %v393, %v394
      %v396 = vadd.f32 %v372, %v395
      %v397 = vmul.f32 %v236, %v396
      %v398 = vmul.f32 %v237, %v396
      %v399 = vmul.f32 %v238, %v396
      %v400 = vmul.f32 %v239, %v396
      %v401 = vmul.f32 %v240, %v396
      %v402 = vmul.f32 %v241, %v396
      %v403 = vmul.f32 %v242, %v396
      %v404 = vmul.f32 %v243, %v396
      %v405 = vadd.f32 %v364, %v397
      %v406 = vadd.f32 %v365, %v398
      %v407 = vadd.f32 %v366, %v399
      %v408 = vadd.f32 %v367, %v400
      %v409 = vadd.f32 %v368, %v401
      %v410 = vadd.f32 %v369, %v402
      %v411 = vadd.f32 %v370, %v403
      %v412 = vadd.f32 %v371, %v404
      %v413 = vadd.f32 %v325, %v405
      %v414 = vadd.f32 %v326, %v406
      %v415 = vadd.f32 %v327, %v407
      %v416 = vadd.f32 %v328, %v408
      %v417 = vadd.f32 %v329, %v409
      %v418 = vadd.f32 %v330, %v410
      %v419 = vadd.f32 %v331, %v411
      %v420 = vadd.f32 %v332, %v412
      %v421 = vld [vmem:[%s4] sm:$0xf]
      %v423 = vsel %vm260, %v413, 0
      %v426 = vsel %vm260, %v414, 0
      %v429 = vsel %vm260, %v415, 0
      %v432 = vsel %vm260, %v416, 0
      %v435 = vsel %vm260, %v417, 0
      %v438 = vsel %vm260, %v418, 0
      %v441 = vsel %vm260, %v419, 0
      %v444 = vsel %vm260, %v420, 0
      %v447 = vsel %vm260, %v405, 0
      %v450 = vsel %vm260, %v406, 0
      %v453 = vsel %vm260, %v407, 0
      %v456 = vsel %vm260, %v408, 0
      %v459 = vsel %vm260, %v409, 0
      %v462 = vsel %vm260, %v410, 0
      %v465 = vsel %vm260, %v411, 0
      %v468 = vsel %vm260, %v412, 0
      %vm470 = vcmask 1043456
      %v472 = vsel %vm470, %v421, 0
      %474 = vmatpush.msra.mxu0 0.0
      %475 = vmatpush.msra.mxu0 0.0
      %476 = vmatpush.msra.mxu0 0.0
      %477 = vmatpush.msra.mxu0 0.0
      %478 = vmatpush.msra.mxu0 0.0
      %479 = vmatpush.msra.mxu0 0.0
      %480 = vmatpush.msra.mxu0 0.0
      %481 = vmatpush.msra.mxu0 0.0
      %482 = vmatpush.msra.mxu0 0.0
      %483 = vmatpush.msra.mxu0 0.0
      %484 = vmatpush.msra.mxu0 0.0
      %485 = vmatpush.msra.mxu0 0.0
      %486 = vmatpush.msra.mxu0 0.0
      %487 = vmatpush.msra.mxu0 0.0
      %488 = vmatpush.msra.mxu0 0.0
      %489 = vmatpush.msra.mxu0 %v472
      %490 = vmatmul.f32.gmra.mxu0 %v423
      %v491 = vpop.f32.mrf.mxu0
      %v492 = vadd.f32 0.0, %v491
      %493 = vmatmul.f32.gmra.mxu0 %v426
      %v494 = vpop.f32.mrf.mxu0
      %v495 = vadd.f32 0.0, %v494
      %496 = vmatmul.f32.gmra.mxu0 %v429
      %v497 = vpop.f32.mrf.mxu0
      %v498 = vadd.f32 0.0, %v497
      %499 = vmatmul.f32.gmra.mxu0 %v432
      %v500 = vpop.f32.mrf.mxu0
      %v501 = vadd.f32 0.0, %v500
      %502 = vmatmul.f32.gmra.mxu0 %v435
      %v503 = vpop.f32.mrf.mxu0
      %v504 = vadd.f32 0.0, %v503
      %505 = vmatmul.f32.gmra.mxu0 %v438
      %v506 = vpop.f32.mrf.mxu0
      %v507 = vadd.f32 0.0, %v506
      %508 = vmatmul.f32.gmra.mxu0 %v441
      %v509 = vpop.f32.mrf.mxu0
      %v510 = vadd.f32 0.0, %v509
      %511 = vmatmul.f32.gmra.mxu0 %v444
      %v512 = vpop.f32.mrf.mxu0
      %v513 = vadd.f32 0.0, %v512
      %514 = vmatmul.f32.gmra.mxu0 %v447
      %v515 = vpop.f32.mrf.mxu0
      %v516 = vadd.f32 0.0, %v515
      %517 = vmatmul.f32.gmra.mxu0 %v450
      %v518 = vpop.f32.mrf.mxu0
      %v519 = vadd.f32 0.0, %v518
      %520 = vmatmul.f32.gmra.mxu0 %v453
      %v521 = vpop.f32.mrf.mxu0
      %v522 = vadd.f32 0.0, %v521
      %523 = vmatmul.f32.gmra.mxu0 %v456
      %v524 = vpop.f32.mrf.mxu0
      %v525 = vadd.f32 0.0, %v524
      %526 = vmatmul.f32.gmra.mxu0 %v459
      %v527 = vpop.f32.mrf.mxu0
      %v528 = vadd.f32 0.0, %v527
      %529 = vmatmul.f32.gmra.mxu0 %v462
      %v530 = vpop.f32.mrf.mxu0
      %v531 = vadd.f32 0.0, %v530
      %532 = vmatmul.f32.gmra.mxu0 %v465
      %v533 = vpop.f32.mrf.mxu0
      %v534 = vadd.f32 0.0, %v533
      %535 = vmatmul.f32.gmra.mxu0 %v468
      %v536 = vpop.f32.mrf.mxu0
      %v537 = vadd.f32 0.0, %v536
      %538 = vdwg.mxu0
      %v539 = vrcp.pop %v492
      %v540 = vmul.f32 %v492, %v539
      %v541 = vsub.f32 1.0, %v540
      %v542 = vmul.f32 %v539, %v541
      %v543 = vadd.f32 %v539, %v542
      %vm544 = vweird.f32 %v492
      %vm545 = vweird.f32 %v539
      %vm546 = vmor %vm544, %vm545
      %v547 = vsel %vm546, %v539, %v543
      %v548 = vand.u32 2147483647, %v492
      %vm549 = vcmp.eq.f32.partialorder %v548, 8.507059e+37
      %v550 = vand.u32 %v492, 2147483648
      %v551 = vor.u32 1.1754944e-38, %v550
      %v552 = vsel %vm549, %v551, %v547
      %v553 = vmul.f32 1.0, %v552
      %v554 = vperm.slane %v553, 0
      %v555 = vmul.f32 %v492, %v554
      %v556 = vmul.f32 %v516, %v554
      %v557 = vperm.slane %v495, 0
      %v558 = vmul.f32 %v557, %v555
      %v559 = vsub.f32 %v495, %v558
      %v560 = vmul.f32 %v557, %v556
      %v561 = vsub.f32 %v519, %v560
      %v562 = vperm.slane %v498, 0
      %v563 = vmul.f32 %v562, %v555
      %v564 = vsub.f32 %v498, %v563
      %v565 = vmul.f32 %v562, %v556
      %v566 = vsub.f32 %v522, %v565
      %v567 = vperm.slane %v501, 0
      %v568 = vmul.f32 %v567, %v555
      %v569 = vsub.f32 %v501, %v568
      %v570 = vmul.f32 %v567, %v556
      %v571 = vsub.f32 %v525, %v570
      %v572 = vperm.slane %v504, 0
      %v573 = vmul.f32 %v572, %v555
      %v574 = vsub.f32 %v504, %v573
      %v575 = vmul.f32 %v572, %v556
      %v576 = vsub.f32 %v528, %v575
      %v577 = vperm.slane %v507, 0
      %v578 = vmul.f32 %v577, %v555
      %v579 = vsub.f32 %v507, %v578
      %v580 = vmul.f32 %v577, %v556
      %v581 = vsub.f32 %v531, %v580
      %v582 = vperm.slane %v510, 0
      %v583 = vmul.f32 %v582, %v555
      %v584 = vsub.f32 %v510, %v583
      %v585 = vmul.f32 %v582, %v556
      %v586 = vsub.f32 %v534, %v585
      %v587 = vperm.slane %v513, 0
      %v588 = vmul.f32 %v587, %v555
      %v589 = vsub.f32 %v513, %v588
      %v590 = vmul.f32 %v587, %v556
      %v591 = vsub.f32 %v537, %v590
      %v592 = vrcp.pop %v559
      %v593 = vmul.f32 %v559, %v592
      %v594 = vsub.f32 1.0, %v593
      %v595 = vmul.f32 %v592, %v594
      %v596 = vadd.f32 %v592, %v595
      %vm597 = vweird.f32 %v559
      %vm598 = vweird.f32 %v592
      %vm599 = vmor %vm597, %vm598
      %v600 = vsel %vm599, %v592, %v596
      %v601 = vand.u32 2147483647, %v559
      %vm602 = vcmp.eq.f32.partialorder %v601, 8.507059e+37
      %v603 = vand.u32 %v559, 2147483648
      %v604 = vor.u32 1.1754944e-38, %v603
      %v605 = vsel %vm602, %v604, %v600
      %v606 = vmul.f32 1.0, %v605
      %v607 = vperm.slane %v606, 1
      %v608 = vmul.f32 %v559, %v607
      %v609 = vmul.f32 %v561, %v607
      %v610 = vperm.slane %v555, 1
      %v611 = vmul.f32 %v610, %v608
      %v612 = vsub.f32 %v555, %v611
      %v613 = vmul.f32 %v610, %v609
      %v614 = vsub.f32 %v556, %v613
      %v615 = vperm.slane %v564, 1
      %v616 = vmul.f32 %v615, %v608
      %v617 = vsub.f32 %v564, %v616
      %v618 = vmul.f32 %v615, %v609
      %v619 = vsub.f32 %v566, %v618
      %v620 = vperm.slane %v569, 1
      %v621 = vmul.f32 %v620, %v608
      %v622 = vsub.f32 %v569, %v621
      %v623 = vmul.f32 %v620, %v609
      %v624 = vsub.f32 %v571, %v623
      %v625 = vperm.slane %v574, 1
      %v626 = vmul.f32 %v625, %v608
      %v627 = vsub.f32 %v574, %v626
      %v628 = vmul.f32 %v625, %v609
      %v629 = vsub.f32 %v576, %v628
      %v630 = vperm.slane %v579, 1
      %v631 = vmul.f32 %v630, %v608
      %v632 = vsub.f32 %v579, %v631
      %v633 = vmul.f32 %v630, %v609
      %v634 = vsub.f32 %v581, %v633
      %v635 = vperm.slane %v584, 1
      %v636 = vmul.f32 %v635, %v608
      %v637 = vsub.f32 %v584, %v636
      %v638 = vmul.f32 %v635, %v609
      %v639 = vsub.f32 %v586, %v638
      %v640 = vperm.slane %v589, 1
      %v641 = vmul.f32 %v640, %v608
      %v642 = vsub.f32 %v589, %v641
      %v643 = vmul.f32 %v640, %v609
      %v644 = vsub.f32 %v591, %v643
      %v645 = vrcp.pop %v617
      %v646 = vmul.f32 %v617, %v645
      %v647 = vsub.f32 1.0, %v646
      %v648 = vmul.f32 %v645, %v647
      %v649 = vadd.f32 %v645, %v648
      %vm650 = vweird.f32 %v617
      %vm651 = vweird.f32 %v645
      %vm652 = vmor %vm650, %vm651
      %v653 = vsel %vm652, %v645, %v649
      %v654 = vand.u32 2147483647, %v617
      %vm655 = vcmp.eq.f32.partialorder %v654, 8.507059e+37
      %v656 = vand.u32 %v617, 2147483648
      %v657 = vor.u32 1.1754944e-38, %v656
      %v658 = vsel %vm655, %v657, %v653
      %v659 = vmul.f32 1.0, %v658
      %v660 = vperm.slane %v659, 2
      %v661 = vmul.f32 %v617, %v660
      %v662 = vmul.f32 %v619, %v660
      %v663 = vperm.slane %v612, 2
      %v664 = vmul.f32 %v663, %v661
      %v665 = vsub.f32 %v612, %v664
      %v666 = vmul.f32 %v663, %v662
      %v667 = vsub.f32 %v614, %v666
      %v668 = vperm.slane %v608, 2
      %v669 = vmul.f32 %v668, %v661
      %v670 = vsub.f32 %v608, %v669
      %v671 = vmul.f32 %v668, %v662
      %v672 = vsub.f32 %v609, %v671
      %v673 = vperm.slane %v622, 2
      %v674 = vmul.f32 %v673, %v661
      %v675 = vsub.f32 %v622, %v674
      %v676 = vmul.f32 %v673, %v662
      %v677 = vsub.f32 %v624, %v676
      %v678 = vperm.slane %v627, 2
      %v679 = vmul.f32 %v678, %v661
      %v680 = vsub.f32 %v627, %v679
      %v681 = vmul.f32 %v678, %v662
      %v682 = vsub.f32 %v629, %v681
      %v683 = vperm.slane %v632, 2
      %v684 = vmul.f32 %v683, %v661
      %v685 = vsub.f32 %v632, %v684
      %v686 = vmul.f32 %v683, %v662
      %v687 = vsub.f32 %v634, %v686
      %v688 = vperm.slane %v637, 2
      %v689 = vmul.f32 %v688, %v661
      %v690 = vsub.f32 %v637, %v689
      %v691 = vmul.f32 %v688, %v662
      %v692 = vsub.f32 %v639, %v691
      %v693 = vperm.slane %v642, 2
      %v694 = vmul.f32 %v693, %v661
      %v695 = vsub.f32 %v642, %v694
      %v696 = vmul.f32 %v693, %v662
      %v697 = vsub.f32 %v644, %v696
      %v698 = vrcp.pop %v675
      %v699 = vmul.f32 %v675, %v698
      %v700 = vsub.f32 1.0, %v699
      %v701 = vmul.f32 %v698, %v700
      %v702 = vadd.f32 %v698, %v701
      %vm703 = vweird.f32 %v675
      %vm704 = vweird.f32 %v698
      %vm705 = vmor %vm703, %vm704
      %v706 = vsel %vm705, %v698, %v702
      %v707 = vand.u32 2147483647, %v675
      %vm708 = vcmp.eq.f32.partialorder %v707, 8.507059e+37
      %v709 = vand.u32 %v675, 2147483648
      %v710 = vor.u32 1.1754944e-38, %v709
      %v711 = vsel %vm708, %v710, %v706
      %v712 = vmul.f32 1.0, %v711
      %v713 = vperm.slane %v712, 3
      %v714 = vmul.f32 %v675, %v713
      %v715 = vmul.f32 %v677, %v713
      %v716 = vperm.slane %v665, 3
      %v717 = vmul.f32 %v716, %v714
      %v718 = vsub.f32 %v665, %v717
      %v719 = vmul.f32 %v716, %v715
      %v720 = vsub.f32 %v667, %v719
      %v721 = vperm.slane %v670, 3
      %v722 = vmul.f32 %v721, %v714
      %v723 = vsub.f32 %v670, %v722
      %v724 = vmul.f32 %v721, %v715
      %v725 = vsub.f32 %v672, %v724
      %v726 = vperm.slane %v661, 3
      %v727 = vmul.f32 %v726, %v714
      %v728 = vsub.f32 %v661, %v727
      %v729 = vmul.f32 %v726, %v715
      %v730 = vsub.f32 %v662, %v729
      %v731 = vperm.slane %v680, 3
      %v732 = vmul.f32 %v731, %v714
      %v733 = vsub.f32 %v680, %v732
      %v734 = vmul.f32 %v731, %v715
      %v735 = vsub.f32 %v682, %v734
      %v736 = vperm.slane %v685, 3
      %v737 = vmul.f32 %v736, %v714
      %v738 = vsub.f32 %v685, %v737
      %v739 = vmul.f32 %v736, %v715
      %v740 = vsub.f32 %v687, %v739
      %v741 = vperm.slane %v690, 3
      %v742 = vmul.f32 %v741, %v714
      %v743 = vsub.f32 %v690, %v742
      %v744 = vmul.f32 %v741, %v715
      %v745 = vsub.f32 %v692, %v744
      %v746 = vperm.slane %v695, 3
      %v747 = vmul.f32 %v746, %v714
      %v748 = vsub.f32 %v695, %v747
      %v749 = vmul.f32 %v746, %v715
      %v750 = vsub.f32 %v697, %v749
      %v751 = vrcp.pop %v733
      %v752 = vmul.f32 %v733, %v751
      %v753 = vsub.f32 1.0, %v752
      %v754 = vmul.f32 %v751, %v753
      %v755 = vadd.f32 %v751, %v754
      %vm756 = vweird.f32 %v733
      %vm757 = vweird.f32 %v751
      %vm758 = vmor %vm756, %vm757
      %v759 = vsel %vm758, %v751, %v755
      %v760 = vand.u32 2147483647, %v733
      %vm761 = vcmp.eq.f32.partialorder %v760, 8.507059e+37
      %v762 = vand.u32 %v733, 2147483648
      %v763 = vor.u32 1.1754944e-38, %v762
      %v764 = vsel %vm761, %v763, %v759
      %v765 = vmul.f32 1.0, %v764
      %v766 = vperm.slane %v765, 4
      %v767 = vmul.f32 %v733, %v766
      %v768 = vmul.f32 %v735, %v766
      %v769 = vperm.slane %v718, 4
      %v770 = vmul.f32 %v769, %v767
      %v771 = vsub.f32 %v718, %v770
      %v772 = vmul.f32 %v769, %v768
      %v773 = vsub.f32 %v720, %v772
      %v774 = vperm.slane %v723, 4
      %v775 = vmul.f32 %v774, %v767
      %v776 = vsub.f32 %v723, %v775
      %v777 = vmul.f32 %v774, %v768
      %v778 = vsub.f32 %v725, %v777
      %v779 = vperm.slane %v728, 4
      %v780 = vmul.f32 %v779, %v767
      %v781 = vsub.f32 %v728, %v780
      %v782 = vmul.f32 %v779, %v768
      %v783 = vsub.f32 %v730, %v782
      %v784 = vperm.slane %v714, 4
      %v785 = vmul.f32 %v784, %v767
      %v786 = vsub.f32 %v714, %v785
      %v787 = vmul.f32 %v784, %v768
      %v788 = vsub.f32 %v715, %v787
      %v789 = vperm.slane %v738, 4
      %v790 = vmul.f32 %v789, %v767
      %v791 = vsub.f32 %v738, %v790
      %v792 = vmul.f32 %v789, %v768
      %v793 = vsub.f32 %v740, %v792
      %v794 = vperm.slane %v743, 4
      %v795 = vmul.f32 %v794, %v767
      %v796 = vsub.f32 %v743, %v795
      %v797 = vmul.f32 %v794, %v768
      %v798 = vsub.f32 %v745, %v797
      %v799 = vperm.slane %v748, 4
      %v800 = vmul.f32 %v799, %v767
      %v801 = vsub.f32 %v748, %v800
      %v802 = vmul.f32 %v799, %v768
      %v803 = vsub.f32 %v750, %v802
      %v804 = vrcp.pop %v791
      %v805 = vmul.f32 %v791, %v804
      %v806 = vsub.f32 1.0, %v805
      %v807 = vmul.f32 %v804, %v806
      %v808 = vadd.f32 %v804, %v807
      %vm809 = vweird.f32 %v791
      %vm810 = vweird.f32 %v804
      %vm811 = vmor %vm809, %vm810
      %v812 = vsel %vm811, %v804, %v808
      %v813 = vand.u32 2147483647, %v791
      %vm814 = vcmp.eq.f32.partialorder %v813, 8.507059e+37
      %v815 = vand.u32 %v791, 2147483648
      %v816 = vor.u32 1.1754944e-38, %v815
      %v817 = vsel %vm814, %v816, %v812
      %v818 = vmul.f32 1.0, %v817
      %v819 = vperm.slane %v818, 5
      %v820 = vmul.f32 %v791, %v819
      %v821 = vmul.f32 %v793, %v819
      %v822 = vperm.slane %v771, 5
      %v823 = vmul.f32 %v822, %v820
      %v824 = vsub.f32 %v771, %v823
      %v825 = vmul.f32 %v822, %v821
      %v826 = vsub.f32 %v773, %v825
      %v827 = vperm.slane %v776, 5
      %v828 = vmul.f32 %v827, %v820
      %v829 = vsub.f32 %v776, %v828
      %v830 = vmul.f32 %v827, %v821
      %v831 = vsub.f32 %v778, %v830
      %v832 = vperm.slane %v781, 5
      %v833 = vmul.f32 %v832, %v820
      %v834 = vsub.f32 %v781, %v833
      %v835 = vmul.f32 %v832, %v821
      %v836 = vsub.f32 %v783, %v835
      %v837 = vperm.slane %v786, 5
      %v838 = vmul.f32 %v837, %v820
      %v839 = vsub.f32 %v786, %v838
      %v840 = vmul.f32 %v837, %v821
      %v841 = vsub.f32 %v788, %v840
      %v842 = vperm.slane %v767, 5
      %v843 = vmul.f32 %v842, %v820
      %v844 = vsub.f32 %v767, %v843
      %v845 = vmul.f32 %v842, %v821
      %v846 = vsub.f32 %v768, %v845
      %v847 = vperm.slane %v796, 5
      %v848 = vmul.f32 %v847, %v820
      %v849 = vsub.f32 %v796, %v848
      %v850 = vmul.f32 %v847, %v821
      %v851 = vsub.f32 %v798, %v850
      %v852 = vperm.slane %v801, 5
      %v853 = vmul.f32 %v852, %v820
      %v854 = vsub.f32 %v801, %v853
      %v855 = vmul.f32 %v852, %v821
      %v856 = vsub.f32 %v803, %v855
      %v857 = vrcp.pop %v849
      %v858 = vmul.f32 %v849, %v857
      %v859 = vsub.f32 1.0, %v858
      %v860 = vmul.f32 %v857, %v859
      %v861 = vadd.f32 %v857, %v860
      %vm862 = vweird.f32 %v849
      %vm863 = vweird.f32 %v857
      %vm864 = vmor %vm862, %vm863
      %v865 = vsel %vm864, %v857, %v861
      %v866 = vand.u32 2147483647, %v849
      %vm867 = vcmp.eq.f32.partialorder %v866, 8.507059e+37
      %v868 = vand.u32 %v849, 2147483648
      %v869 = vor.u32 1.1754944e-38, %v868
      %v870 = vsel %vm867, %v869, %v865
      %v871 = vmul.f32 1.0, %v870
      %v872 = vperm.slane %v871, 6
      %v873 = vmul.f32 %v849, %v872
      %v874 = vmul.f32 %v851, %v872
      %v875 = vperm.slane %v824, 6
      %v876 = vmul.f32 %v875, %v873
      %v877 = vsub.f32 %v824, %v876
      %v878 = vmul.f32 %v875, %v874
      %v879 = vsub.f32 %v826, %v878
      %v880 = vperm.slane %v829, 6
      %v881 = vmul.f32 %v880, %v873
      %v882 = vsub.f32 %v829, %v881
      %v883 = vmul.f32 %v880, %v874
      %v884 = vsub.f32 %v831, %v883
      %v885 = vperm.slane %v834, 6
      %v886 = vmul.f32 %v885, %v873
      %v887 = vsub.f32 %v834, %v886
      %v888 = vmul.f32 %v885, %v874
      %v889 = vsub.f32 %v836, %v888
      %v890 = vperm.slane %v839, 6
      %v891 = vmul.f32 %v890, %v873
      %v892 = vsub.f32 %v839, %v891
      %v893 = vmul.f32 %v890, %v874
      %v894 = vsub.f32 %v841, %v893
      %v895 = vperm.slane %v844, 6
      %v896 = vmul.f32 %v895, %v873
      %v897 = vsub.f32 %v844, %v896
      %v898 = vmul.f32 %v895, %v874
      %v899 = vsub.f32 %v846, %v898
      %v900 = vperm.slane %v820, 6
      %v901 = vmul.f32 %v900, %v873
      %v902 = vsub.f32 %v820, %v901
      %v903 = vmul.f32 %v900, %v874
      %v904 = vsub.f32 %v821, %v903
      %v905 = vperm.slane %v854, 6
      %v906 = vmul.f32 %v905, %v873
      %v907 = vsub.f32 %v854, %v906
      %v908 = vmul.f32 %v905, %v874
      %v909 = vsub.f32 %v856, %v908
      %v910 = vrcp.pop %v907
      %v911 = vmul.f32 %v907, %v910
      %v912 = vsub.f32 1.0, %v911
      %v913 = vmul.f32 %v910, %v912
      %v914 = vadd.f32 %v910, %v913
      %vm915 = vweird.f32 %v907
      %vm916 = vweird.f32 %v910
      %vm917 = vmor %vm915, %vm916
      %v918 = vsel %vm917, %v910, %v914
      %v919 = vand.u32 2147483647, %v907
      %vm920 = vcmp.eq.f32.partialorder %v919, 8.507059e+37
      %v921 = vand.u32 %v907, 2147483648
      %v922 = vor.u32 1.1754944e-38, %v921
      %v923 = vsel %vm920, %v922, %v918
      %v924 = vmul.f32 1.0, %v923
      %v925 = vperm.slane %v924, 7
      %v926 = vmul.f32 %v909, %v925
      %v927 = vperm.slane %v877, 7
      %v928 = vmul.f32 %v927, %v926
      %v929 = vsub.f32 %v879, %v928
      %v930 = vperm.slane %v882, 7
      %v931 = vmul.f32 %v930, %v926
      %v932 = vsub.f32 %v884, %v931
      %v933 = vperm.slane %v887, 7
      %v934 = vmul.f32 %v933, %v926
      %v935 = vsub.f32 %v889, %v934
      %v936 = vperm.slane %v892, 7
      %v937 = vmul.f32 %v936, %v926
      %v938 = vsub.f32 %v894, %v937
      %v939 = vperm.slane %v897, 7
      %v940 = vmul.f32 %v939, %v926
      %v941 = vsub.f32 %v899, %v940
      %v942 = vperm.slane %v902, 7
      %v943 = vmul.f32 %v942, %v926
      %v944 = vsub.f32 %v904, %v943
      %v945 = vperm.slane %v873, 7
      %v946 = vmul.f32 %v945, %v926
      %v947 = vsub.f32 %v874, %v946
      %v948 = vld [vmem:[%s214] sm:$0xff]
      %v949 = vmul.f32 %v948, 2.0
      %v950 = vsub.f32 %v949, 1.0
      %v951 = vmul.f32 %v948, %v929
      %v952 = vsub.f32 1.0, %v948
      %v953 = vsub.f32 1.0, %v929
      %v954 = vmul.f32 %v952, %v953
      %v955 = vadd.f32 %v951, %v954
      %v956 = vperm.slane %v950, 0
      %v957 = vmul.f32 %v929, %v956
      %vm958 = vcmp.eq.s32.totalorder %v228, 1
      %v959 = vperm.slane %v955, 0
      %v960 = vsel %vm958, %v959, %v957
      %v961 = vmul.f32 %v948, %v932
      %v962 = vsub.f32 1.0, %v932
      %v963 = vmul.f32 %v952, %v962
      %v964 = vadd.f32 %v961, %v963
      %v965 = vperm.slane %v950, 1
      %v966 = vmul.f32 %v932, %v965
      %vm967 = vcmp.eq.s32.totalorder %v229, 1
      %v968 = vperm.slane %v964, 1
      %v969 = vsel %vm967, %v968, %v966
      %v970 = vmul.f32 %v948, %v935
      %v971 = vsub.f32 1.0, %v935
      %v972 = vmul.f32 %v952, %v971
      %v973 = vadd.f32 %v970, %v972
      %v974 = vperm.slane %v950, 2
      %v975 = vmul.f32 %v935, %v974
      %vm976 = vcmp.eq.s32.totalorder %v230, 1
      %v977 = vperm.slane %v973, 2
      %v978 = vsel %vm976, %v977, %v975
      %v979 = vmul.f32 %v948, %v938
      %v980 = vsub.f32 1.0, %v938
      %v981 = vmul.f32 %v952, %v980
      %v982 = vadd.f32 %v979, %v981
      %v983 = vperm.slane %v950, 3
      %v984 = vmul.f32 %v938, %v983
      %vm985 = vcmp.eq.s32.totalorder %v231, 1
      %v986 = vperm.slane %v982, 3
      %v987 = vsel %vm985, %v986, %v984
      %v988 = vmul.f32 %v948, %v941
      %v989 = vsub.f32 1.0, %v941
      %v990 = vmul.f32 %v952, %v989
      %v991 = vadd.f32 %v988, %v990
      %v992 = vperm.slane %v950, 4
      %v993 = vmul.f32 %v941, %v992
      %vm994 = vcmp.eq.s32.totalorder %v232, 1
      %v995 = vperm.slane %v991, 4
      %v996 = vsel %vm994, %v995, %v993
      %v997 = vmul.f32 %v948, %v944
      %v998 = vsub.f32 1.0, %v944
      %v999 = vmul.f32 %v952, %v998
      %v1000 = vadd.f32 %v997, %v999
      %v1001 = vperm.slane %v950, 5
      %v1002 = vmul.f32 %v944, %v1001
      %vm1003 = vcmp.eq.s32.totalorder %v233, 1
      %v1004 = vperm.slane %v1000, 5
      %v1005 = vsel %vm1003, %v1004, %v1002
      %v1006 = vmul.f32 %v948, %v947
      %v1007 = vsub.f32 1.0, %v947
      %v1008 = vmul.f32 %v952, %v1007
      %v1009 = vadd.f32 %v1006, %v1008
      %v1010 = vperm.slane %v950, 6
      %v1011 = vmul.f32 %v947, %v1010
      %vm1012 = vcmp.eq.s32.totalorder %v234, 1
      %v1013 = vperm.slane %v1009, 6
      %v1014 = vsel %vm1012, %v1013, %v1011
      %v1015 = vmul.f32 %v948, %v926
      %v1016 = vsub.f32 1.0, %v926
      %v1017 = vmul.f32 %v952, %v1016
      %v1018 = vadd.f32 %v1015, %v1017
      %v1019 = vperm.slane %v950, 7
      %v1020 = vmul.f32 %v926, %v1019
      %vm1021 = vcmp.eq.s32.totalorder %v235, 1
      %v1022 = vperm.slane %v1018, 7
      %v1023 = vsel %vm1021, %v1022, %v1020
      %v1024 = vld [vmem:[%s0] sm:$0xf]
      %vm1025 = vcmask 3072
      %v1026 = vsel %vm1025, %v1024, -inf
      %v1027 = vrot.slane %v1026, 4
      %v1028 = vmax.f32 %v1026, %v1027
      %v1029 = vrot.slane %v1028, 2
      %v1030 = vmax.f32 %v1028, %v1029
      %v1031 = vrot.slane %v1030, 1
      %v1032 = vmax.f32 %v1030, %v1031
      %v1033 = vsub.f32 %v1024, %v1032
      %v1034 = vmul.f32 %v1033, 1.442695
      %v1035 = vpow.pop %v1034
      %v1036 = vsel %vm1025, %v1035, 0.0
      %v1037 = vrot.slane %v1036, 4
      %v1038 = vadd.f32 %v1036, %v1037
      %v1039 = vrot.slane %v1038, 2
      %v1040 = vadd.f32 %v1038, %v1039
      %v1041 = vrot.slane %v1040, 1
      %v1042 = vadd.f32 %v1040, %v1041
      %v1043 = vrcp.pop %v1042
      %v1044 = vmul.f32 %v1042, %v1043
      %v1045 = vsub.f32 1.0, %v1044
      %v1046 = vmul.f32 %v1043, %v1045
      %v1047 = vadd.f32 %v1043, %v1046
      %vm1048 = vweird.f32 %v1042
      %vm1049 = vweird.f32 %v1043
      %vm1050 = vmor %vm1048, %vm1049
      %v1051 = vsel %vm1050, %v1043, %v1047
      %v1052 = vand.u32 2147483647, %v1042
      %vm1053 = vcmp.eq.f32.partialorder %v1052, 8.507059e+37
      %v1054 = vand.u32 %v1042, 2147483648
      %v1055 = vor.u32 1.1754944e-38, %v1054
      %v1056 = vsel %vm1053, %v1055, %v1051
      %v1057 = vmul.f32 1.0, %v1056
      %v1058 = vmul.f32 %v1035, %v1057
      %1060 = vset.pattern.permute.xlu0 0
      %1061 = vperm.xlu0 %1060, %v1058
      %v1062 = vpop.permute.xlu0 %1061
      %v1064 = vmul.f32 %v1062, %v421
      %v1065 = vsel %vm470, %v1064, 0.0
      %v1066 = vrot.slane %v1065, 4
      %v1067 = vadd.f32 %v1065, %v1066
      %v1068 = vrot.slane %v1067, 2
      %v1069 = vadd.f32 %v1067, %v1068
      %v1070 = vrot.slane %v1069, 1
      %v1071 = vadd.f32 %v1069, %v1070
      %v1072 = vmul.f32 %v1071, %v960
      %v1073 = vrcp.pop %v960
      %v1074 = vmul.f32 %v969, %v1073
      %v1075 = vperm.slane %v1074, 0
      %v1076 = vmul.f32 %v1075, %v960
      %v1077 = vsub.f32 %v969, %v1076
      %v1078 = vmul.f32 %v978, %v1073
      %v1079 = vperm.slane %v1078, 0
      %v1080 = vmul.f32 %v1079, %v960
      %v1081 = vsub.f32 %v978, %v1080
      %v1082 = vmul.f32 %v987, %v1073
      %v1083 = vperm.slane %v1082, 0
      %v1084 = vmul.f32 %v1083, %v960
      %v1085 = vsub.f32 %v987, %v1084
      %v1086 = vmul.f32 %v996, %v1073
      %v1087 = vperm.slane %v1086, 0
      %v1088 = vmul.f32 %v1087, %v960
      %v1089 = vsub.f32 %v996, %v1088
      %v1090 = vmul.f32 %v1005, %v1073
      %v1091 = vperm.slane %v1090, 0
      %v1092 = vmul.f32 %v1091, %v960
      %v1093 = vsub.f32 %v1005, %v1092
      %v1094 = vmul.f32 %v1014, %v1073
      %v1095 = vperm.slane %v1094, 0
      %v1096 = vmul.f32 %v1095, %v960
      %v1097 = vsub.f32 %v1014, %v1096
      %v1098 = vmul.f32 %v1023, %v1073
      %v1099 = vperm.slane %v1098, 0
      %v1100 = vmul.f32 %v1099, %v960
      %v1101 = vsub.f32 %v1023, %v1100
      %v1103 = vrot.slane %v1077, 1
      %v1105 = vmul.f32 %v1072, %v1103
      %v1106 = vrcp.pop %v1077
      %v1107 = vmul.f32 %v1081, %v1106
      %v1108 = vperm.slane %v1107, 1
      %v1109 = vmul.f32 %v1108, %v1077
      %v1110 = vsub.f32 %v1081, %v1109
      %v1111 = vmul.f32 %v1085, %v1106
      %v1112 = vperm.slane %v1111, 1
      %v1113 = vmul.f32 %v1112, %v1077
      %v1114 = vsub.f32 %v1085, %v1113
      %v1115 = vmul.f32 %v1089, %v1106
      %v1116 = vperm.slane %v1115, 1
      %v1117 = vmul.f32 %v1116, %v1077
      %v1118 = vsub.f32 %v1089, %v1117
      %v1119 = vmul.f32 %v1093, %v1106
      %v1120 = vperm.slane %v1119, 1
      %v1121 = vmul.f32 %v1120, %v1077
      %v1122 = vsub.f32 %v1093, %v1121
      %v1123 = vmul.f32 %v1097, %v1106
      %v1124 = vperm.slane %v1123, 1
      %v1125 = vmul.f32 %v1124, %v1077
      %v1126 = vsub.f32 %v1097, %v1125
      %v1127 = vmul.f32 %v1101, %v1106
      %v1128 = vperm.slane %v1127, 1
      %v1129 = vmul.f32 %v1128, %v1077
      %v1130 = vsub.f32 %v1101, %v1129
      %v1132 = vrot.slane %v1110, 2
      %v1134 = vmul.f32 %v1105, %v1132
      %v1135 = vrcp.pop %v1110
      %v1136 = vmul.f32 %v1114, %v1135
      %v1137 = vperm.slane %v1136, 2
      %v1138 = vmul.f32 %v1137, %v1110
      %v1139 = vsub.f32 %v1114, %v1138
      %v1140 = vmul.f32 %v1118, %v1135
      %v1141 = vperm.slane %v1140, 2
      %v1142 = vmul.f32 %v1141, %v1110
      %v1143 = vsub.f32 %v1118, %v1142
      %v1144 = vmul.f32 %v1122, %v1135
      %v1145 = vperm.slane %v1144, 2
      %v1146 = vmul.f32 %v1145, %v1110
      %v1147 = vsub.f32 %v1122, %v1146
      %v1148 = vmul.f32 %v1126, %v1135
      %v1149 = vperm.slane %v1148, 2
      %v1150 = vmul.f32 %v1149, %v1110
      %v1151 = vsub.f32 %v1126, %v1150
      %v1152 = vmul.f32 %v1130, %v1135
      %v1153 = vperm.slane %v1152, 2
      %v1154 = vmul.f32 %v1153, %v1110
      %v1155 = vsub.f32 %v1130, %v1154
      %v1157 = vrot.slane %v1139, 3
      %v1159 = vmul.f32 %v1134, %v1157
      %v1160 = vrcp.pop %v1139
      %v1161 = vmul.f32 %v1143, %v1160
      %v1162 = vperm.slane %v1161, 3
      %v1163 = vmul.f32 %v1162, %v1139
      %v1164 = vsub.f32 %v1143, %v1163
      %v1165 = vmul.f32 %v1147, %v1160
      %v1166 = vperm.slane %v1165, 3
      %v1167 = vmul.f32 %v1166, %v1139
      %v1168 = vsub.f32 %v1147, %v1167
      %v1169 = vmul.f32 %v1151, %v1160
      %v1170 = vperm.slane %v1169, 3
      %v1171 = vmul.f32 %v1170, %v1139
      %v1172 = vsub.f32 %v1151, %v1171
      %v1173 = vmul.f32 %v1155, %v1160
      %v1174 = vperm.slane %v1173, 3
      %v1175 = vmul.f32 %v1174, %v1139
      %v1176 = vsub.f32 %v1155, %v1175
      %v1178 = vrot.slane %v1164, 4
      %v1180 = vmul.f32 %v1159, %v1178
      %v1181 = vrcp.pop %v1164
      %v1182 = vmul.f32 %v1168, %v1181
      %v1183 = vperm.slane %v1182, 4
      %v1184 = vmul.f32 %v1183, %v1164
      %v1185 = vsub.f32 %v1168, %v1184
      %v1186 = vmul.f32 %v1172, %v1181
      %v1187 = vperm.slane %v1186, 4
      %v1188 = vmul.f32 %v1187, %v1164
      %v1189 = vsub.f32 %v1172, %v1188
      %v1190 = vmul.f32 %v1176, %v1181
      %v1191 = vperm.slane %v1190, 4
      %v1192 = vmul.f32 %v1191, %v1164
      %v1193 = vsub.f32 %v1176, %v1192
      %v1195 = vrot.slane %v1185, 5
      %v1197 = vmul.f32 %v1180, %v1195
      %v1198 = vrcp.pop %v1185
      %v1199 = vmul.f32 %v1189, %v1198
      %v1200 = vperm.slane %v1199, 5
      %v1201 = vmul.f32 %v1200, %v1185
      %v1202 = vsub.f32 %v1189, %v1201
      %v1203 = vmul.f32 %v1193, %v1198
      %v1204 = vperm.slane %v1203, 5
      %v1205 = vmul.f32 %v1204, %v1185
      %v1206 = vsub.f32 %v1193, %v1205
      %v1208 = vrot.slane %v1202, 6
      %v1210 = vmul.f32 %v1197, %v1208
      %v1211 = vrcp.pop %v1202
      %v1212 = vmul.f32 %v1206, %v1211
      %v1213 = vperm.slane %v1212, 6
      %v1214 = vmul.f32 %v1213, %v1202
      %v1215 = vsub.f32 %v1206, %v1214
      %v1217 = vrot.slane %v1215, 7
      %v1219 = vmul.f32 %v1210, %v1217
      %1221 = vrot.lane.b32.xlu0 %v1219, 96
      %v1222 = vpop.permute.xlu0 %1221
      %v1224 = vadd.f32 %v1219, %v1222
      %1225 = vrot.lane.b32.xlu0 %v1219, 64
      %v1226 = vpop.permute.xlu0 %1225
      %v1228 = vadd.f32 %v1224, %v1226
      %1229 = vrot.lane.b32.xlu0 %v1219, 32
      %v1230 = vpop.permute.xlu0 %1229
      %v1232 = vadd.f32 %v1228, %v1230
      %v1233 = vlog2.pop %v1232
      %v1234 = vmul.f32 %v1233, 0.6931472
      %vm1235 = vcmask 253952
      %v1236 = vsel %vm1235, %v1234, 0.0
      %1237 = vadd.xlane.f32.xlu0 %v1236
      %v1238 = vpop.xlane.xlu0 %1237
      %vm1239 = vcmask 0
      %1240 = vst.msk [vmem:[%s217] sm:$0x1] %vm1239, %v1238
      %p1241 = scmp.lt.s32.totalorder %s16, 1
      %s1242 = scalar_select %p1241, %s16, 1
      %s1243 = scalar_lea.vmem %s5, %s1242
      // Predicated region
      $region41: #{mograssmann_forward.1} parent=39 // pred_check
        %p1244 = pneg %p144
      $region42: #{mograssmann_forward.1} parent=39 // pred_check_branch
        %1246 = sbr.rel (%p1244) target = $region44
      $region43: #{mograssmann_forward.1} parent=39 // pred_region
        _
      $region44: #{mograssmann_forward.1} parent=39 // pred_fallthru
        _
    $region40: #{mograssmann_forward.1} parent=5 // pred_fallthru
      _
    %p1247 = scmp.le.s32.totalorder 2, %s11
    // Predicated region
    $region45: #{mograssmann_forward.1} parent=5 // pred_check
      %p1248 = pneg %p1247
    $region46: #{mograssmann_forward.1} parent=5 // pred_check_branch
      %1250 = sbr.rel (%p1248) target = $region48
    $region47: #{mograssmann_forward.1} parent=5 // pred_region
      %s1251 = ssub.s32 %s11, 2
      // Predicated region
      $region49: #{mograssmann_forward.1} parent=47 // pred_check
        %p1252 = pneg %p150
      $region50: #{mograssmann_forward.1} parent=47 // pred_check_branch
        %1254 = sbr.rel (%p1252) target = $region52
      $region51: #{mograssmann_forward.1} parent=47 // pred_region
        %p1255 = scmp.lt.s32.totalorder %s17, 1
        %s1256 = scalar_select %p1255, %s17, 1
        %s1257 = scalar_lea.vmem %s5, %s1256
      $region52: #{mograssmann_forward.1} parent=47 // pred_fallthru
        _
    $region48: #{mograssmann_forward.1} parent=5 // pred_fallthru
      _
  $region6: #{mograssmann_forward.1} parent=0 // loop_footer
    %s15 = sadd.s32 1, %s11
  $region7: #{mograssmann_forward.1} parent=0 // loop_footer_branch
    %10 = sbr.rel target = $region3
  $region8: #{mograssmann_forward.1} parent=0 // loop_exit
    _

</llo_original>
